<compile_context>
chip_gen: v7x
topology: tpu7x:2x2x1
jax: 0.10.0
libtpu: 0.0.40
codegen_flags: <defaults>
</compile_context>

<pallas_src>
import math
from functools import partial

import jax
import jax.numpy as jnp
from jax.experimental import pallas as pl
from jax.experimental.pallas import tpu as pltpu


def _encoder_layer_kernel(x_ref, mask_ref,
                          wqkv_ref, bqkv_ref, wo_ref, bo_ref,
                          g1_ref, be1_ref,
                          wff1_ref, bff1_ref, wff2_ref, bff2_ref,
                          g2_ref, be2_ref,
                          out_ref, attn_ref,
                          *, n_heads, d_k, d_v, eps):
    # Per-batch slabs (block leading dim is 1 -> squeeze it with [0]).
    x = x_ref[0]                     # (S, d_model) f32
    masked = mask_ref[0] != 0        # (S, S) bool, True == masked

    # ---- fused Q/K/V projection: one wide matmul ------------------------
    # (1/sqrt(d_k) is already folded into the Q columns of wqkv on the host.)
    qkv = jnp.dot(x, wqkv_ref[...], preferred_element_type=jnp.float32) + bqkv_ref[0]
    hk = n_heads * d_k
    q_s = qkv[:, :hk]                # (S, H*d_k), pre-scaled
    k_s = qkv[:, hk:2 * hk]          # (S, H*d_k)
    v_s = qkv[:, 2 * hk:]            # (S, H*d_v)

    neg_inf = jnp.float32(-1e9)

    # Static (unrolled) loop over heads; everything stays 2-D / MXU-friendly.
    # No stack of (S,S) tiles, no concat of 8-wide context slices.
    attn_out = None
    for h in range(n_heads):
        qh = q_s[:, h * d_k:(h + 1) * d_k]     # (S, d_k)
        kh = k_s[:, h * d_k:(h + 1) * d_k]     # (S, d_k)
        vh = v_s[:, h * d_v:(h + 1) * d_v]     # (S, d_v)

        # q @ k^T without materializing a transpose: contract last axes.
        scores = jax.lax.dot_general(
            qh, kh, (((1,), (1,)), ((), ())),
            preferred_element_type=jnp.float32)            # (S, S)
        scores = jnp.where(masked, neg_inf, scores)

        # softmax over last axis (divide -> EUP reciprocal, frees VALU)
        m = jnp.max(scores, axis=-1, keepdims=True)
        e = jnp.exp(scores - m)
        inv_sum = pl.reciprocal(jnp.sum(e, axis=-1, keepdims=True), approx=True)
        attn_h = e * inv_sum                                # (S, S)

        # Write this head's attention map straight to the output ref.
        attn_ref[0, h, :, :] = attn_h.astype(attn_ref.dtype)

        ctx_h = jnp.dot(attn_h, vh, preferred_element_type=jnp.float32)  # (S, d_v)

        # Accumulate the output projection per head (no context concat).
        part = jnp.dot(ctx_h, wo_ref[h * d_v:(h + 1) * d_v, :],
                       preferred_element_type=jnp.float32)               # (S, d_model)
        attn_out = part if attn_out is None else attn_out + part

    attn_out = attn_out + bo_ref[0]

    # ---- residual + LayerNorm 1 (biased variance, like nn.LayerNorm) ----
    a = attn_out + x
    mean1 = jnp.mean(a, axis=-1, keepdims=True)
    var1 = jnp.mean((a - mean1) ** 2, axis=-1, keepdims=True)
    a = (a - mean1) * jax.lax.rsqrt(var1 + eps)
    a = a * g1_ref[0] + be1_ref[0]

    # ---- position-wise FFN (two 1x1 convs == two linears) ---------------
    h1 = jnp.dot(a, wff1_ref[...], preferred_element_type=jnp.float32) + bff1_ref[0]
    h1 = jnp.maximum(h1, 0.0)                                            # ReLU
    f = jnp.dot(h1, wff2_ref[...], preferred_element_type=jnp.float32) + bff2_ref[0]

    # ---- residual + LayerNorm 2 ------------------------------------------
    y = f + a
    mean2 = jnp.mean(y, axis=-1, keepdims=True)
    var2 = jnp.mean((y - mean2) ** 2, axis=-1, keepdims=True)
    y = (y - mean2) * jax.lax.rsqrt(var2 + eps)
    y = y * g2_ref[0] + be2_ref[0]

    out_ref[...] = y[None].astype(out_ref.dtype)


def encoder_layer(enc_inputs, enc_self_attn_mask, params, *,
                  n_heads, d_k, d_v, eps=1e-5):
    """enc_inputs: (B, S, d_model) f32; enc_self_attn_mask: (B, S, S) bool/int
    (nonzero == masked).  Returns (enc_outputs, attn)."""
    B, S, d_model = enc_inputs.shape
    mask_i32 = enc_self_attn_mask.astype(jnp.int32)

    scale = 1.0 / math.sqrt(d_k)

    # PyTorch-style (out, in) weights -> (in, out); fold 1/sqrt(d_k) into Q;
    # fuse Q|K|V into a single wide projection.
    wq = params["W_Q_w"].T * scale
    bq = params["W_Q_b"] * scale
    wk = params["W_K_w"].T
    bk = params["W_K_b"]
    wv = params["W_V_w"].T
    bv = params["W_V_b"]
    w_qkv = jnp.concatenate([wq, wk, wv], axis=1)          # (d_model, H*(2*d_k+d_v))
    b_qkv = jnp.concatenate([bq, bk, bv])[None, :]

    wo = params["linear_w"].T                              # (H*d_v, d_model)
    bo = params["linear_b"][None, :]
    g1 = params["ln1_w"][None, :]
    be1 = params["ln1_b"][None, :]
    w1 = params["ff1_w"].T                                 # (d_model, d_ff)
    b1 = params["ff1_b"][None, :]
    w2 = params["ff2_w"].T                                 # (d_ff, d_model)
    b2 = params["ff2_b"][None, :]
    g2 = params["ln2_w"][None, :]
    be2 = params["ln2_b"][None, :]

    def rep(arr):
        nd = arr.ndim
        return pl.BlockSpec(arr.shape, lambda b, _n=nd: (0,) * _n)

    grid_spec = pltpu.PrefetchScalarGridSpec(
        num_scalar_prefetch=0,
        grid=(B,),
        in_specs=[
            pl.BlockSpec((1, S, d_model), lambda b: (b, 0, 0)),   # enc_inputs
            pl.BlockSpec((1, S, S), lambda b: (b, 0, 0)),         # mask
            rep(w_qkv), rep(b_qkv),
            rep(wo), rep(bo),
            rep(g1), rep(be1),
            rep(w1), rep(b1),
            rep(w2), rep(b2),
            rep(g2), rep(be2),
        ],
        out_specs=[
            pl.BlockSpec((1, S, d_model), lambda b: (b, 0, 0)),
            pl.BlockSpec((1, n_heads, S, S), lambda b: (b, 0, 0, 0)),
        ],
    )

    kernel = partial(_encoder_layer_kernel,
                     n_heads=n_heads, d_k=d_k, d_v=d_v, eps=eps)

    out, attn = pl.pallas_call(
        kernel,
        grid_spec=grid_spec,
        out_shape=(
            jax.ShapeDtypeStruct((B, S, d_model), jnp.float32),
            jax.ShapeDtypeStruct((B, n_heads, S, S), jnp.float32),
        ),
        compiler_params=pltpu.CompilerParams(
            dimension_semantics=("parallel",)),
    )(enc_inputs, mask_i32, w_qkv, b_qkv, wo, bo,
      g1, be1, w1, b1, w2, b2, g2, be2)
    return out, attn


def init_params(key, d_model, n_heads, d_k, d_v, d_ff):
    ks = jax.random.split(key, 12)

    def lin(kw, kb, out_f, in_f):
        bound = 1.0 / math.sqrt(in_f)
        w = jax.random.uniform(kw, (out_f, in_f), jnp.float32, -bound, bound)
        b = jax.random.uniform(kb, (out_f,), jnp.float32, -bound, bound)
        return w, b

    wq, bq = lin(ks[0], ks[1], n_heads * d_k, d_model)
    wk, bk = lin(ks[2], ks[3], n_heads * d_k, d_model)
    wv, bv = lin(ks[4], ks[5], n_heads * d_v, d_model)
    wo, bo = lin(ks[6], ks[7], d_model, n_heads * d_v)
    # Conv1d(kernel_size=1) == Linear in (out, in) layout.
    w1, b1 = lin(ks[8], ks[9], d_ff, d_model)
    w2, b2 = lin(ks[10], ks[11], d_model, d_ff)
    return {
        "W_Q_w": wq, "W_Q_b": bq,
        "W_K_w": wk, "W_K_b": bk,
        "W_V_w": wv, "W_V_b": bv,
        "linear_w": wo, "linear_b": bo,
        "ln1_w": jnp.ones((d_model,), jnp.float32),
        "ln1_b": jnp.zeros((d_model,), jnp.float32),
        "ff1_w": w1, "ff1_b": b1,
        "ff2_w": w2, "ff2_b": b2,
        "ln2_w": jnp.ones((d_model,), jnp.float32),
        "ln2_b": jnp.zeros((d_model,), jnp.float32),
    }


if __name__ == "__main__":
    # Small shapes consistent with the module's forward.
    B, S = 2, 8
    d_model, n_layers, n_heads, d_k, d_v, d_ff = 32, 1, 4, 8, 8, 64

    key = jax.random.PRNGKey(0)
    kx, kp = jax.random.split(key)
    enc_inputs = jax.random.normal(kx, (B, S, d_model), jnp.float32)

    # Boolean self-attention mask (True == masked), like the PyTorch attn_mask.
    causal = jnp.triu(jnp.ones((S, S), jnp.bool_), k=1)
    enc_self_attn_mask = jnp.broadcast_to(causal, (B, S, S))

    params = init_params(kp, d_model, n_heads, d_k, d_v, d_ff)

    out, attn = encoder_layer(enc_inputs, enc_self_attn_mask, params,
                              n_heads=n_heads, d_k=d_k, d_v=d_v)
    jax.block_until_ready((out, attn))

    assert out.shape == (B, S, d_model)
    assert attn.shape == (B, n_heads, S, S)
    print("KERNEL_OK")
</pallas_src>

<mosaic_0001>
module attributes {stable_mosaic.version = 11 : i64} {
  func.func @_encoder_layer_kernel(%arg0: i32, %arg1: memref<1x8x32xf32, #tpu.memory_space<vmem>>, %arg2: memref<1x8x8xi32, #tpu.memory_space<vmem>>, %arg3: memref<32x96xf32, #tpu.memory_space<vmem>>, %arg4: memref<1x96xf32, #tpu.memory_space<vmem>>, %arg5: memref<32x32xf32, #tpu.memory_space<vmem>>, %arg6: memref<1x32xf32, #tpu.memory_space<vmem>>, %arg7: memref<1x32xf32, #tpu.memory_space<vmem>>, %arg8: memref<1x32xf32, #tpu.memory_space<vmem>>, %arg9: memref<32x64xf32, #tpu.memory_space<vmem>>, %arg10: memref<1x64xf32, #tpu.memory_space<vmem>>, %arg11: memref<64x32xf32, #tpu.memory_space<vmem>>, %arg12: memref<1x32xf32, #tpu.memory_space<vmem>>, %arg13: memref<1x32xf32, #tpu.memory_space<vmem>>, %arg14: memref<1x32xf32, #tpu.memory_space<vmem>>, %arg15: memref<1x8x32xf32, #tpu.memory_space<vmem>>, %arg16: memref<1x4x8x8xf32, #tpu.memory_space<vmem>>) attributes {dimension_semantics = [#tpu.dimension_semantics<parallel>], iteration_bounds = array<i64: 2>, scalar_prefetch = 0 : i64, scratch_operands = 0 : i64, tpu.core_type = #tpu.core_type<tc>, window_params = [{transform_indices = @transform_0, window_bounds = array<i64: 1, 8, 32>}, {transform_indices = @transform_1, window_bounds = array<i64: 1, 8, 8>}, {pipeline_mode = #tpu.pipeline_mode<synchronous>, transform_indices = @transform_2, window_bounds = array<i64: 32, 96>}, {pipeline_mode = #tpu.pipeline_mode<synchronous>, transform_indices = @transform_3, window_bounds = array<i64: 1, 96>}, {pipeline_mode = #tpu.pipeline_mode<synchronous>, transform_indices = @transform_4, window_bounds = array<i64: 32, 32>}, {pipeline_mode = #tpu.pipeline_mode<synchronous>, transform_indices = @transform_5, window_bounds = array<i64: 1, 32>}, {pipeline_mode = #tpu.pipeline_mode<synchronous>, transform_indices = @transform_6, window_bounds = array<i64: 1, 32>}, {pipeline_mode = #tpu.pipeline_mode<synchronous>, transform_indices = @transform_7, window_bounds = array<i64: 1, 32>}, {pipeline_mode = #tpu.pipeline_mode<synchronous>, transform_indices = @transform_8, window_bounds = array<i64: 32, 64>}, {pipeline_mode = #tpu.pipeline_mode<synchronous>, transform_indices = @transform_9, window_bounds = array<i64: 1, 64>}, {pipeline_mode = #tpu.pipeline_mode<synchronous>, transform_indices = @transform_10, window_bounds = array<i64: 64, 32>}, {pipeline_mode = #tpu.pipeline_mode<synchronous>, transform_indices = @transform_11, window_bounds = array<i64: 1, 32>}, {pipeline_mode = #tpu.pipeline_mode<synchronous>, transform_indices = @transform_12, window_bounds = array<i64: 1, 32>}, {pipeline_mode = #tpu.pipeline_mode<synchronous>, transform_indices = @transform_13, window_bounds = array<i64: 1, 32>}, {transform_indices = @transform_14, window_bounds = array<i64: 1, 8, 32>}, {transform_indices = @transform_15, window_bounds = array<i64: 1, 4, 8, 8>}]} {
    %c0 = arith.constant 0 : index
    %c0_0 = arith.constant 0 : index
    %c0_1 = arith.constant 0 : index
    %0 = vector.load %arg1[%c0, %c0_0, %c0_1] : memref<1x8x32xf32, #tpu.memory_space<vmem>>, vector<1x8x32xf32>
    %1 = vector.shape_cast %0 : vector<1x8x32xf32> to vector<8x32xf32>
    %c0_2 = arith.constant 0 : index
    %c0_3 = arith.constant 0 : index
    %c0_4 = arith.constant 0 : index
    %2 = vector.load %arg2[%c0_2, %c0_3, %c0_4] : memref<1x8x8xi32, #tpu.memory_space<vmem>>, vector<1x8x8xi32>
    %3 = vector.shape_cast %2 : vector<1x8x8xi32> to vector<8x8xi32>
    %c0_i32 = arith.constant 0 : i32
    %4 = vector.broadcast %c0_i32 : i32 to vector<8x8xi32>
    %5 = arith.cmpi ne, %3, %4 : vector<8x8xi32>
    %c0_5 = arith.constant 0 : index
    %c0_6 = arith.constant 0 : index
    %6 = vector.load %arg3[%c0_5, %c0_6] : memref<32x96xf32, #tpu.memory_space<vmem>>, vector<32x96xf32>
    %cst = arith.constant dense<0.000000e+00> : vector<8x96xf32>
    %7 = tpu.matmul %1, %6, %cst {dimension_numbers = #tpu.dot_dimension_numbers<[1], [0], [0], [1], [0, 0, 1, 1], [], []>} : vector<8x32xf32>, vector<32x96xf32>, vector<8x96xf32> -> vector<8x96xf32>
    %c0_7 = arith.constant 0 : index
    %c0_8 = arith.constant 0 : index
    %8 = vector.load %arg4[%c0_7, %c0_8] : memref<1x96xf32, #tpu.memory_space<vmem>>, vector<1x96xf32>
    %9 = vector.shape_cast %8 : vector<1x96xf32> to vector<96xf32>
    %10 = vector.shape_cast %9 : vector<96xf32> to vector<1x96xf32>
    %11 = vector.broadcast %10 : vector<1x96xf32> to vector<8x96xf32>
    %12 = arith.addf %7, %11 : vector<8x96xf32>
    %13 = vector.extract_strided_slice %12 {offsets = [0, 0], sizes = [8, 32], strides = [1, 1]} : vector<8x96xf32> to vector<8x32xf32>
    %14 = vector.extract_strided_slice %12 {offsets = [0, 32], sizes = [8, 32], strides = [1, 1]} : vector<8x96xf32> to vector<8x32xf32>
    %15 = vector.extract_strided_slice %12 {offsets = [0, 64], sizes = [8, 32], strides = [1, 1]} : vector<8x96xf32> to vector<8x32xf32>
    %16 = vector.extract_strided_slice %13 {offsets = [0, 0], sizes = [8, 8], strides = [1, 1]} : vector<8x32xf32> to vector<8x8xf32>
    %17 = vector.extract_strided_slice %14 {offsets = [0, 0], sizes = [8, 8], strides = [1, 1]} : vector<8x32xf32> to vector<8x8xf32>
    %18 = vector.extract_strided_slice %15 {offsets = [0, 0], sizes = [8, 8], strides = [1, 1]} : vector<8x32xf32> to vector<8x8xf32>
    %cst_9 = arith.constant dense<0.000000e+00> : vector<8x8xf32>
    %19 = tpu.matmul %16, %17, %cst_9 {dimension_numbers = #tpu.dot_dimension_numbers<[1], [1], [0], [0], [0, 0, 1, 0], [], []>} : vector<8x8xf32>, vector<8x8xf32>, vector<8x8xf32> -> vector<8x8xf32>
    %cst_10 = arith.constant -1.000000e+09 : f32
    %20 = vector.broadcast %cst_10 : f32 to vector<8x8xf32>
    %21 = arith.select %5, %20, %19 : vector<8x8xi1>, vector<8x8xf32>
    %cst_11 = arith.constant dense<0xFF800000> : vector<8xf32>
    %22 = vector.multi_reduction <maximumf>, %21, %cst_11 [1] : vector<8x8xf32> to vector<8xf32>
    %23 = vector.shape_cast %22 : vector<8xf32> to vector<8x1xf32>
    %24 = vector.broadcast %23 : vector<8x1xf32> to vector<8x8xf32>
    %25 = arith.subf %21, %24 : vector<8x8xf32>
    %26 = math.exp %25 : vector<8x8xf32>
    %cst_12 = arith.constant dense<0.000000e+00> : vector<8xf32>
    %27 = vector.multi_reduction <add>, %26, %cst_12 [1] : vector<8x8xf32> to vector<8xf32>
    %28 = vector.shape_cast %27 : vector<8xf32> to vector<8x1xf32>
    %29 = tpu.reciprocal %28 {approx = true} : vector<8x1xf32> -> vector<8x1xf32>
    %30 = vector.broadcast %29 : vector<8x1xf32> to vector<8x8xf32>
    %31 = arith.mulf %26, %30 : vector<8x8xf32>
    %c0_13 = arith.constant 0 : index
    %c0_14 = arith.constant 0 : index
    %c0_15 = arith.constant 0 : index
    %c0_16 = arith.constant 0 : index
    %32 = vector.load %arg16[%c0_13, %c0_14, %c0_15, %c0_16] : memref<1x4x8x8xf32, #tpu.memory_space<vmem>>, vector<1x1x8x8xf32>
    %33 = vector.shape_cast %32 : vector<1x1x8x8xf32> to vector<8x8xf32>
    %34 = vector.shape_cast %31 : vector<8x8xf32> to vector<1x1x8x8xf32>
    tpu.vector_store %arg16[%c0_13, %c0_14, %c0_15, %c0_16], %34 {strides = array<i32>} : memref<1x4x8x8xf32, #tpu.memory_space<vmem>>, vector<1x1x8x8xf32>,
    %cst_17 = arith.constant dense<0.000000e+00> : vector<8x8xf32>
    %35 = tpu.matmul %31, %18, %cst_17 {dimension_numbers = #tpu.dot_dimension_numbers<[1], [0], [0], [1], [0, 0, 1, 1], [], []>} : vector<8x8xf32>, vector<8x8xf32>, vector<8x8xf32> -> vector<8x8xf32>
    %c0_18 = arith.constant 0 : index
    %c0_19 = arith.constant 0 : index
    %36 = vector.load %arg5[%c0_18, %c0_19] : memref<32x32xf32, #tpu.memory_space<vmem>>, vector<8x32xf32>
    %cst_20 = arith.constant dense<0.000000e+00> : vector<8x32xf32>
    %37 = tpu.matmul %35, %36, %cst_20 {dimension_numbers = #tpu.dot_dimension_numbers<[1], [0], [0], [1], [0, 0, 1, 1], [], []>} : vector<8x8xf32>, vector<8x32xf32>, vector<8x32xf32> -> vector<8x32xf32>
    %38 = vector.extract_strided_slice %13 {offsets = [0, 8], sizes = [8, 8], strides = [1, 1]} : vector<8x32xf32> to vector<8x8xf32>
    %39 = vector.extract_strided_slice %14 {offsets = [0, 8], sizes = [8, 8], strides = [1, 1]} : vector<8x32xf32> to vector<8x8xf32>
    %40 = vector.extract_strided_slice %15 {offsets = [0, 8], sizes = [8, 8], strides = [1, 1]} : vector<8x32xf32> to vector<8x8xf32>
    %cst_21 = arith.constant dense<0.000000e+00> : vector<8x8xf32>
    %41 = tpu.matmul %38, %39, %cst_21 {dimension_numbers = #tpu.dot_dimension_numbers<[1], [1], [0], [0], [0, 0, 1, 0], [], []>} : vector<8x8xf32>, vector<8x8xf32>, vector<8x8xf32> -> vector<8x8xf32>
    %cst_22 = arith.constant -1.000000e+09 : f32
    %42 = vector.broadcast %cst_22 : f32 to vector<8x8xf32>
    %43 = arith.select %5, %42, %41 : vector<8x8xi1>, vector<8x8xf32>
    %cst_23 = arith.constant dense<0xFF800000> : vector<8xf32>
    %44 = vector.multi_reduction <maximumf>, %43, %cst_23 [1] : vector<8x8xf32> to vector<8xf32>
    %45 = vector.shape_cast %44 : vector<8xf32> to vector<8x1xf32>
    %46 = vector.broadcast %45 : vector<8x1xf32> to vector<8x8xf32>
    %47 = arith.subf %43, %46 : vector<8x8xf32>
    %48 = math.exp %47 : vector<8x8xf32>
    %cst_24 = arith.constant dense<0.000000e+00> : vector<8xf32>
    %49 = vector.multi_reduction <add>, %48, %cst_24 [1] : vector<8x8xf32> to vector<8xf32>
    %50 = vector.shape_cast %49 : vector<8xf32> to vector<8x1xf32>
    %51 = tpu.reciprocal %50 {approx = true} : vector<8x1xf32> -> vector<8x1xf32>
    %52 = vector.broadcast %51 : vector<8x1xf32> to vector<8x8xf32>
    %53 = arith.mulf %48, %52 : vector<8x8xf32>
    %c0_25 = arith.constant 0 : index
    %c1 = arith.constant 1 : index
    %c0_26 = arith.constant 0 : index
    %c0_27 = arith.constant 0 : index
    %54 = vector.load %arg16[%c0_25, %c1, %c0_26, %c0_27] : memref<1x4x8x8xf32, #tpu.memory_space<vmem>>, vector<1x1x8x8xf32>
    %55 = vector.shape_cast %54 : vector<1x1x8x8xf32> to vector<8x8xf32>
    %56 = vector.shape_cast %53 : vector<8x8xf32> to vector<1x1x8x8xf32>
    tpu.vector_store %arg16[%c0_25, %c1, %c0_26, %c0_27], %56 {strides = array<i32>} : memref<1x4x8x8xf32, #tpu.memory_space<vmem>>, vector<1x1x8x8xf32>,
    %cst_28 = arith.constant dense<0.000000e+00> : vector<8x8xf32>
    %57 = tpu.matmul %53, %40, %cst_28 {dimension_numbers = #tpu.dot_dimension_numbers<[1], [0], [0], [1], [0, 0, 1, 1], [], []>} : vector<8x8xf32>, vector<8x8xf32>, vector<8x8xf32> -> vector<8x8xf32>
    %c8 = arith.constant 8 : index
    %c0_29 = arith.constant 0 : index
    %58 = vector.load %arg5[%c8, %c0_29] : memref<32x32xf32, #tpu.memory_space<vmem>>, vector<8x32xf32>
    %cst_30 = arith.constant dense<0.000000e+00> : vector<8x32xf32>
    %59 = tpu.matmul %57, %58, %cst_30 {dimension_numbers = #tpu.dot_dimension_numbers<[1], [0], [0], [1], [0, 0, 1, 1], [], []>} : vector<8x8xf32>, vector<8x32xf32>, vector<8x32xf32> -> vector<8x32xf32>
    %60 = arith.addf %37, %59 : vector<8x32xf32>
    %61 = vector.extract_strided_slice %13 {offsets = [0, 16], sizes = [8, 8], strides = [1, 1]} : vector<8x32xf32> to vector<8x8xf32>
    %62 = vector.extract_strided_slice %14 {offsets = [0, 16], sizes = [8, 8], strides = [1, 1]} : vector<8x32xf32> to vector<8x8xf32>
    %63 = vector.extract_strided_slice %15 {offsets = [0, 16], sizes = [8, 8], strides = [1, 1]} : vector<8x32xf32> to vector<8x8xf32>
    %cst_31 = arith.constant dense<0.000000e+00> : vector<8x8xf32>
    %64 = tpu.matmul %61, %62, %cst_31 {dimension_numbers = #tpu.dot_dimension_numbers<[1], [1], [0], [0], [0, 0, 1, 0], [], []>} : vector<8x8xf32>, vector<8x8xf32>, vector<8x8xf32> -> vector<8x8xf32>
    %cst_32 = arith.constant -1.000000e+09 : f32
    %65 = vector.broadcast %cst_32 : f32 to vector<8x8xf32>
    %66 = arith.select %5, %65, %64 : vector<8x8xi1>, vector<8x8xf32>
    %cst_33 = arith.constant dense<0xFF800000> : vector<8xf32>
    %67 = vector.multi_reduction <maximumf>, %66, %cst_33 [1] : vector<8x8xf32> to vector<8xf32>
    %68 = vector.shape_cast %67 : vector<8xf32> to vector<8x1xf32>
    %69 = vector.broadcast %68 : vector<8x1xf32> to vector<8x8xf32>
    %70 = arith.subf %66, %69 : vector<8x8xf32>
    %71 = math.exp %70 : vector<8x8xf32>
    %cst_34 = arith.constant dense<0.000000e+00> : vector<8xf32>
    %72 = vector.multi_reduction <add>, %71, %cst_34 [1] : vector<8x8xf32> to vector<8xf32>
    %73 = vector.shape_cast %72 : vector<8xf32> to vector<8x1xf32>
    %74 = tpu.reciprocal %73 {approx = true} : vector<8x1xf32> -> vector<8x1xf32>
    %75 = vector.broadcast %74 : vector<8x1xf32> to vector<8x8xf32>
    %76 = arith.mulf %71, %75 : vector<8x8xf32>
    %c0_35 = arith.constant 0 : index
    %c2 = arith.constant 2 : index
    %c0_36 = arith.constant 0 : index
    %c0_37 = arith.constant 0 : index
    %77 = vector.load %arg16[%c0_35, %c2, %c0_36, %c0_37] : memref<1x4x8x8xf32, #tpu.memory_space<vmem>>, vector<1x1x8x8xf32>
    %78 = vector.shape_cast %77 : vector<1x1x8x8xf32> to vector<8x8xf32>
    %79 = vector.shape_cast %76 : vector<8x8xf32> to vector<1x1x8x8xf32>
    tpu.vector_store %arg16[%c0_35, %c2, %c0_36, %c0_37], %79 {strides = array<i32>} : memref<1x4x8x8xf32, #tpu.memory_space<vmem>>, vector<1x1x8x8xf32>,
    %cst_38 = arith.constant dense<0.000000e+00> : vector<8x8xf32>
    %80 = tpu.matmul %76, %63, %cst_38 {dimension_numbers = #tpu.dot_dimension_numbers<[1], [0], [0], [1], [0, 0, 1, 1], [], []>} : vector<8x8xf32>, vector<8x8xf32>, vector<8x8xf32> -> vector<8x8xf32>
    %c16 = arith.constant 16 : index
    %c0_39 = arith.constant 0 : index
    %81 = vector.load %arg5[%c16, %c0_39] : memref<32x32xf32, #tpu.memory_space<vmem>>, vector<8x32xf32>
    %cst_40 = arith.constant dense<0.000000e+00> : vector<8x32xf32>
    %82 = tpu.matmul %80, %81, %cst_40 {dimension_numbers = #tpu.dot_dimension_numbers<[1], [0], [0], [1], [0, 0, 1, 1], [], []>} : vector<8x8xf32>, vector<8x32xf32>, vector<8x32xf32> -> vector<8x32xf32>
    %83 = arith.addf %60, %82 : vector<8x32xf32>
    %84 = vector.extract_strided_slice %13 {offsets = [0, 24], sizes = [8, 8], strides = [1, 1]} : vector<8x32xf32> to vector<8x8xf32>
    %85 = vector.extract_strided_slice %14 {offsets = [0, 24], sizes = [8, 8], strides = [1, 1]} : vector<8x32xf32> to vector<8x8xf32>
    %86 = vector.extract_strided_slice %15 {offsets = [0, 24], sizes = [8, 8], strides = [1, 1]} : vector<8x32xf32> to vector<8x8xf32>
    %cst_41 = arith.constant dense<0.000000e+00> : vector<8x8xf32>
    %87 = tpu.matmul %84, %85, %cst_41 {dimension_numbers = #tpu.dot_dimension_numbers<[1], [1], [0], [0], [0, 0, 1, 0], [], []>} : vector<8x8xf32>, vector<8x8xf32>, vector<8x8xf32> -> vector<8x8xf32>
    %cst_42 = arith.constant -1.000000e+09 : f32
    %88 = vector.broadcast %cst_42 : f32 to vector<8x8xf32>
    %89 = arith.select %5, %88, %87 : vector<8x8xi1>, vector<8x8xf32>
    %cst_43 = arith.constant dense<0xFF800000> : vector<8xf32>
    %90 = vector.multi_reduction <maximumf>, %89, %cst_43 [1] : vector<8x8xf32> to vector<8xf32>
    %91 = vector.shape_cast %90 : vector<8xf32> to vector<8x1xf32>
    %92 = vector.broadcast %91 : vector<8x1xf32> to vector<8x8xf32>
    %93 = arith.subf %89, %92 : vector<8x8xf32>
    %94 = math.exp %93 : vector<8x8xf32>
    %cst_44 = arith.constant dense<0.000000e+00> : vector<8xf32>
    %95 = vector.multi_reduction <add>, %94, %cst_44 [1] : vector<8x8xf32> to vector<8xf32>
    %96 = vector.shape_cast %95 : vector<8xf32> to vector<8x1xf32>
    %97 = tpu.reciprocal %96 {approx = true} : vector<8x1xf32> -> vector<8x1xf32>
    %98 = vector.broadcast %97 : vector<8x1xf32> to vector<8x8xf32>
    %99 = arith.mulf %94, %98 : vector<8x8xf32>
    %c0_45 = arith.constant 0 : index
    %c3 = arith.constant 3 : index
    %c0_46 = arith.constant 0 : index
    %c0_47 = arith.constant 0 : index
    %100 = vector.load %arg16[%c0_45, %c3, %c0_46, %c0_47] : memref<1x4x8x8xf32, #tpu.memory_space<vmem>>, vector<1x1x8x8xf32>
    %101 = vector.shape_cast %100 : vector<1x1x8x8xf32> to vector<8x8xf32>
    %102 = vector.shape_cast %99 : vector<8x8xf32> to vector<1x1x8x8xf32>
    tpu.vector_store %arg16[%c0_45, %c3, %c0_46, %c0_47], %102 {strides = array<i32>} : memref<1x4x8x8xf32, #tpu.memory_space<vmem>>, vector<1x1x8x8xf32>,
    %cst_48 = arith.constant dense<0.000000e+00> : vector<8x8xf32>
    %103 = tpu.matmul %99, %86, %cst_48 {dimension_numbers = #tpu.dot_dimension_numbers<[1], [0], [0], [1], [0, 0, 1, 1], [], []>} : vector<8x8xf32>, vector<8x8xf32>, vector<8x8xf32> -> vector<8x8xf32>
    %c24 = arith.constant 24 : index
    %c0_49 = arith.constant 0 : index
    %104 = vector.load %arg5[%c24, %c0_49] : memref<32x32xf32, #tpu.memory_space<vmem>>, vector<8x32xf32>
    %cst_50 = arith.constant dense<0.000000e+00> : vector<8x32xf32>
    %105 = tpu.matmul %103, %104, %cst_50 {dimension_numbers = #tpu.dot_dimension_numbers<[1], [0], [0], [1], [0, 0, 1, 1], [], []>} : vector<8x8xf32>, vector<8x32xf32>, vector<8x32xf32> -> vector<8x32xf32>
    %106 = arith.addf %83, %105 : vector<8x32xf32>
    %c0_51 = arith.constant 0 : index
    %c0_52 = arith.constant 0 : index
    %107 = vector.load %arg6[%c0_51, %c0_52] : memref<1x32xf32, #tpu.memory_space<vmem>>, vector<1x32xf32>
    %108 = vector.shape_cast %107 : vector<1x32xf32> to vector<32xf32>
    %109 = vector.shape_cast %108 : vector<32xf32> to vector<1x32xf32>
    %110 = vector.broadcast %109 : vector<1x32xf32> to vector<8x32xf32>
    %111 = arith.addf %106, %110 : vector<8x32xf32>
    %112 = arith.addf %111, %1 : vector<8x32xf32>
    %cst_53 = arith.constant dense<0.000000e+00> : vector<8xf32>
    %113 = vector.multi_reduction <add>, %112, %cst_53 [1] : vector<8x32xf32> to vector<8xf32>
    %114 = vector.shape_cast %113 : vector<8xf32> to vector<8x1xf32>
    %cst_54 = arith.constant 3.200000e+01 : f32
    %115 = vector.broadcast %cst_54 : f32 to vector<8x1xf32>
    %116 = arith.divf %114, %115 : vector<8x1xf32>
    %117 = vector.broadcast %116 : vector<8x1xf32> to vector<8x32xf32>
    %118 = arith.subf %112, %117 : vector<8x32xf32>
    %119 = arith.mulf %118, %118 : vector<8x32xf32>
    %cst_55 = arith.constant dense<0.000000e+00> : vector<8xf32>
    %120 = vector.multi_reduction <add>, %119, %cst_55 [1] : vector<8x32xf32> to vector<8xf32>
    %121 = vector.shape_cast %120 : vector<8xf32> to vector<8x1xf32>
    %cst_56 = arith.constant 3.200000e+01 : f32
    %122 = vector.broadcast %cst_56 : f32 to vector<8x1xf32>
    %123 = arith.divf %121, %122 : vector<8x1xf32>
    %124 = vector.broadcast %116 : vector<8x1xf32> to vector<8x32xf32>
    %125 = arith.subf %112, %124 : vector<8x32xf32>
    %cst_57 = arith.constant 9.99999974E-6 : f32
    %126 = vector.broadcast %cst_57 : f32 to vector<8x1xf32>
    %127 = arith.addf %123, %126 : vector<8x1xf32>
    %128 = math.rsqrt %127 : vector<8x1xf32>
    %129 = vector.broadcast %128 : vector<8x1xf32> to vector<8x32xf32>
    %130 = arith.mulf %125, %129 : vector<8x32xf32>
    %c0_58 = arith.constant 0 : index
    %c0_59 = arith.constant 0 : index
    %131 = vector.load %arg7[%c0_58, %c0_59] : memref<1x32xf32, #tpu.memory_space<vmem>>, vector<1x32xf32>
    %132 = vector.shape_cast %131 : vector<1x32xf32> to vector<32xf32>
    %133 = vector.shape_cast %132 : vector<32xf32> to vector<1x32xf32>
    %134 = vector.broadcast %133 : vector<1x32xf32> to vector<8x32xf32>
    %135 = arith.mulf %130, %134 : vector<8x32xf32>
    %c0_60 = arith.constant 0 : index
    %c0_61 = arith.constant 0 : index
    %136 = vector.load %arg8[%c0_60, %c0_61] : memref<1x32xf32, #tpu.memory_space<vmem>>, vector<1x32xf32>
    %137 = vector.shape_cast %136 : vector<1x32xf32> to vector<32xf32>
    %138 = vector.shape_cast %137 : vector<32xf32> to vector<1x32xf32>
    %139 = vector.broadcast %138 : vector<1x32xf32> to vector<8x32xf32>
    %140 = arith.addf %135, %139 : vector<8x32xf32>
    %c0_62 = arith.constant 0 : index
    %c0_63 = arith.constant 0 : index
    %141 = vector.load %arg9[%c0_62, %c0_63] : memref<32x64xf32, #tpu.memory_space<vmem>>, vector<32x64xf32>
    %cst_64 = arith.constant dense<0.000000e+00> : vector<8x64xf32>
    %142 = tpu.matmul %140, %141, %cst_64 {dimension_numbers = #tpu.dot_dimension_numbers<[1], [0], [0], [1], [0, 0, 1, 1], [], []>} : vector<8x32xf32>, vector<32x64xf32>, vector<8x64xf32> -> vector<8x64xf32>
    %c0_65 = arith.constant 0 : index
    %c0_66 = arith.constant 0 : index
    %143 = vector.load %arg10[%c0_65, %c0_66] : memref<1x64xf32, #tpu.memory_space<vmem>>, vector<1x64xf32>
    %144 = vector.shape_cast %143 : vector<1x64xf32> to vector<64xf32>
    %145 = vector.shape_cast %144 : vector<64xf32> to vector<1x64xf32>
    %146 = vector.broadcast %145 : vector<1x64xf32> to vector<8x64xf32>
    %147 = arith.addf %142, %146 : vector<8x64xf32>
    %cst_67 = arith.constant 0.000000e+00 : f32
    %148 = vector.broadcast %cst_67 : f32 to vector<8x64xf32>
    %149 = arith.maximumf %147, %148 : vector<8x64xf32>
    %c0_68 = arith.constant 0 : index
    %c0_69 = arith.constant 0 : index
    %150 = vector.load %arg11[%c0_68, %c0_69] : memref<64x32xf32, #tpu.memory_space<vmem>>, vector<64x32xf32>
    %cst_70 = arith.constant dense<0.000000e+00> : vector<8x32xf32>
    %151 = tpu.matmul %149, %150, %cst_70 {dimension_numbers = #tpu.dot_dimension_numbers<[1], [0], [0], [1], [0, 0, 1, 1], [], []>} : vector<8x64xf32>, vector<64x32xf32>, vector<8x32xf32> -> vector<8x32xf32>
    %c0_71 = arith.constant 0 : index
    %c0_72 = arith.constant 0 : index
    %152 = vector.load %arg12[%c0_71, %c0_72] : memref<1x32xf32, #tpu.memory_space<vmem>>, vector<1x32xf32>
    %153 = vector.shape_cast %152 : vector<1x32xf32> to vector<32xf32>
    %154 = vector.shape_cast %153 : vector<32xf32> to vector<1x32xf32>
    %155 = vector.broadcast %154 : vector<1x32xf32> to vector<8x32xf32>
    %156 = arith.addf %151, %155 : vector<8x32xf32>
    %157 = arith.addf %156, %140 : vector<8x32xf32>
    %cst_73 = arith.constant dense<0.000000e+00> : vector<8xf32>
    %158 = vector.multi_reduction <add>, %157, %cst_73 [1] : vector<8x32xf32> to vector<8xf32>
    %159 = vector.shape_cast %158 : vector<8xf32> to vector<8x1xf32>
    %cst_74 = arith.constant 3.200000e+01 : f32
    %160 = vector.broadcast %cst_74 : f32 to vector<8x1xf32>
    %161 = arith.divf %159, %160 : vector<8x1xf32>
    %162 = vector.broadcast %161 : vector<8x1xf32> to vector<8x32xf32>
    %163 = arith.subf %157, %162 : vector<8x32xf32>
    %164 = arith.mulf %163, %163 : vector<8x32xf32>
    %cst_75 = arith.constant dense<0.000000e+00> : vector<8xf32>
    %165 = vector.multi_reduction <add>, %164, %cst_75 [1] : vector<8x32xf32> to vector<8xf32>
    %166 = vector.shape_cast %165 : vector<8xf32> to vector<8x1xf32>
    %cst_76 = arith.constant 3.200000e+01 : f32
    %167 = vector.broadcast %cst_76 : f32 to vector<8x1xf32>
    %168 = arith.divf %166, %167 : vector<8x1xf32>
    %169 = vector.broadcast %161 : vector<8x1xf32> to vector<8x32xf32>
    %170 = arith.subf %157, %169 : vector<8x32xf32>
    %cst_77 = arith.constant 9.99999974E-6 : f32
    %171 = vector.broadcast %cst_77 : f32 to vector<8x1xf32>
    %172 = arith.addf %168, %171 : vector<8x1xf32>
    %173 = math.rsqrt %172 : vector<8x1xf32>
    %174 = vector.broadcast %173 : vector<8x1xf32> to vector<8x32xf32>
    %175 = arith.mulf %170, %174 : vector<8x32xf32>
    %c0_78 = arith.constant 0 : index
    %c0_79 = arith.constant 0 : index
    %176 = vector.load %arg13[%c0_78, %c0_79] : memref<1x32xf32, #tpu.memory_space<vmem>>, vector<1x32xf32>
    %177 = vector.shape_cast %176 : vector<1x32xf32> to vector<32xf32>
    %178 = vector.shape_cast %177 : vector<32xf32> to vector<1x32xf32>
    %179 = vector.broadcast %178 : vector<1x32xf32> to vector<8x32xf32>
    %180 = arith.mulf %175, %179 : vector<8x32xf32>
    %c0_80 = arith.constant 0 : index
    %c0_81 = arith.constant 0 : index
    %181 = vector.load %arg14[%c0_80, %c0_81] : memref<1x32xf32, #tpu.memory_space<vmem>>, vector<1x32xf32>
    %182 = vector.shape_cast %181 : vector<1x32xf32> to vector<32xf32>
    %183 = vector.shape_cast %182 : vector<32xf32> to vector<1x32xf32>
    %184 = vector.broadcast %183 : vector<1x32xf32> to vector<8x32xf32>
    %185 = arith.addf %180, %184 : vector<8x32xf32>
    %186 = vector.shape_cast %185 : vector<8x32xf32> to vector<1x8x32xf32>
    %c0_82 = arith.constant 0 : index
    %c0_83 = arith.constant 0 : index
    %c0_84 = arith.constant 0 : index
    %187 = vector.load %arg15[%c0_82, %c0_83, %c0_84] : memref<1x8x32xf32, #tpu.memory_space<vmem>>, vector<1x8x32xf32>
    tpu.vector_store %arg15[%c0_82, %c0_83, %c0_84], %186 {strides = array<i32>} : memref<1x8x32xf32, #tpu.memory_space<vmem>>, vector<1x8x32xf32>,
    return
  }
  func.func @transform_0(%arg0: i32) -> (i32, i32, i32) {
    %c0_i32 = arith.constant 0 : i32
    %c0_i32_0 = arith.constant 0 : i32
    %c0_i32_1 = arith.constant 0 : i32
    return %arg0, %c0_i32, %c0_i32_0 : i32, i32, i32
  }
  func.func @transform_1(%arg0: i32) -> (i32, i32, i32) {
    %c0_i32 = arith.constant 0 : i32
    %c0_i32_0 = arith.constant 0 : i32
    %c0_i32_1 = arith.constant 0 : i32
    return %arg0, %c0_i32, %c0_i32_0 : i32, i32, i32
  }
  func.func @transform_2(%arg0: i32) -> (i32, i32) {
    %c0_i32 = arith.constant 0 : i32
    %c0_i32_0 = arith.constant 0 : i32
    %c0_i32_1 = arith.constant 0 : i32
    return %c0_i32, %c0_i32_0 : i32, i32
  }
  func.func @transform_3(%arg0: i32) -> (i32, i32) {
    %c0_i32 = arith.constant 0 : i32
    %c0_i32_0 = arith.constant 0 : i32
    %c0_i32_1 = arith.constant 0 : i32
    return %c0_i32, %c0_i32_0 : i32, i32
  }
  func.func @transform_4(%arg0: i32) -> (i32, i32) {
    %c0_i32 = arith.constant 0 : i32
    %c0_i32_0 = arith.constant 0 : i32
    %c0_i32_1 = arith.constant 0 : i32
    return %c0_i32, %c0_i32_0 : i32, i32
  }
  func.func @transform_5(%arg0: i32) -> (i32, i32) {
    %c0_i32 = arith.constant 0 : i32
    %c0_i32_0 = arith.constant 0 : i32
    %c0_i32_1 = arith.constant 0 : i32
    return %c0_i32, %c0_i32_0 : i32, i32
  }
  func.func @transform_6(%arg0: i32) -> (i32, i32) {
    %c0_i32 = arith.constant 0 : i32
    %c0_i32_0 = arith.constant 0 : i32
    %c0_i32_1 = arith.constant 0 : i32
    return %c0_i32, %c0_i32_0 : i32, i32
  }
  func.func @transform_7(%arg0: i32) -> (i32, i32) {
    %c0_i32 = arith.constant 0 : i32
    %c0_i32_0 = arith.constant 0 : i32
    %c0_i32_1 = arith.constant 0 : i32
    return %c0_i32, %c0_i32_0 : i32, i32
  }
  func.func @transform_8(%arg0: i32) -> (i32, i32) {
    %c0_i32 = arith.constant 0 : i32
    %c0_i32_0 = arith.constant 0 : i32
    %c0_i32_1 = arith.constant 0 : i32
    return %c0_i32, %c0_i32_0 : i32, i32
  }
  func.func @transform_9(%arg0: i32) -> (i32, i32) {
    %c0_i32 = arith.constant 0 : i32
    %c0_i32_0 = arith.constant 0 : i32
    %c0_i32_1 = arith.constant 0 : i32
    return %c0_i32, %c0_i32_0 : i32, i32
  }
  func.func @transform_10(%arg0: i32) -> (i32, i32) {
    %c0_i32 = arith.constant 0 : i32
    %c0_i32_0 = arith.constant 0 : i32
    %c0_i32_1 = arith.constant 0 : i32
    return %c0_i32, %c0_i32_0 : i32, i32
  }
  func.func @transform_11(%arg0: i32) -> (i32, i32) {
    %c0_i32 = arith.constant 0 : i32
    %c0_i32_0 = arith.constant 0 : i32
    %c0_i32_1 = arith.constant 0 : i32
    return %c0_i32, %c0_i32_0 : i32, i32
  }
  func.func @transform_12(%arg0: i32) -> (i32, i32) {
    %c0_i32 = arith.constant 0 : i32
    %c0_i32_0 = arith.constant 0 : i32
    %c0_i32_1 = arith.constant 0 : i32
    return %c0_i32, %c0_i32_0 : i32, i32
  }
  func.func @transform_13(%arg0: i32) -> (i32, i32) {
    %c0_i32 = arith.constant 0 : i32
    %c0_i32_0 = arith.constant 0 : i32
    %c0_i32_1 = arith.constant 0 : i32
    return %c0_i32, %c0_i32_0 : i32, i32
  }
  func.func @transform_14(%arg0: i32) -> (i32, i32, i32) {
    %c0_i32 = arith.constant 0 : i32
    %c0_i32_0 = arith.constant 0 : i32
    %c0_i32_1 = arith.constant 0 : i32
    return %arg0, %c0_i32, %c0_i32_0 : i32, i32, i32
  }
  func.func @transform_15(%arg0: i32) -> (i32, i32, i32, i32) {
    %c0_i32 = arith.constant 0 : i32
    %c0_i32_0 = arith.constant 0 : i32
    %c0_i32_1 = arith.constant 0 : i32
    %c0_i32_2 = arith.constant 0 : i32
    return %arg0, %c0_i32, %c0_i32_0, %c0_i32_1 : i32, i32, i32, i32
  }
}

</mosaic_0001>

<llo_original>
// kernel: tpu_custom_call.1
$region0: #{tpu_custom_call.1}
  #allocation0 [shape = 'u32[]', space=smem, size = 0x4, offset = 0x4, fixed_abs, tag = 'smem constant byte address 0x4 - core index']
  #allocation1 [shape = 'u32[144,128]{1,0:T(1,128)}', space=vmem, size = 0x12000, scoped, tag = 'internal scratch']
  %s0 = inlined_call_operand.hbm [shape: f32[2,8,32], index: 0, kind: input, shape index: {}]
  %s1 = inlined_call_operand.hbm [shape: s32[2,8,8], index: 1, kind: input, shape index: {}]
  %s2 = inlined_call_operand.vmem [shape: f32[32,96], index: 2, kind: input, shape index: {}]
  %s3 = inlined_call_operand.vmem [shape: f32[1,96], index: 3, kind: input, shape index: {}]
  %s4 = inlined_call_operand.vmem [shape: f32[32,32], index: 4, kind: input, shape index: {}]
  %s5 = inlined_call_operand.vmem [shape: f32[1,32], index: 5, kind: input, shape index: {}]
  %s6 = inlined_call_operand.vmem [shape: f32[1,32], index: 6, kind: input, shape index: {}]
  %s7 = inlined_call_operand.vmem [shape: f32[1,32], index: 7, kind: input, shape index: {}]
  %s8 = inlined_call_operand.vmem [shape: f32[32,64], index: 8, kind: input, shape index: {}]
  %s9 = inlined_call_operand.vmem [shape: f32[1,64], index: 9, kind: input, shape index: {}]
  %s10 = inlined_call_operand.vmem [shape: f32[64,32], index: 10, kind: input, shape index: {}]
  %s11 = inlined_call_operand.vmem [shape: f32[1,32], index: 11, kind: input, shape index: {}]
  %s12 = inlined_call_operand.vmem [shape: f32[1,32], index: 12, kind: input, shape index: {}]
  %s13 = inlined_call_operand.vmem [shape: f32[1,32], index: 13, kind: input, shape index: {}]
  %s14 = inlined_call_operand.hbm [shape: f32[2,8,32], index: 14, kind: output, shape index: {0}]
  %s15 = inlined_call_operand.hbm [shape: f32[2,4,8,8], index: 15, kind: output, shape index: {1}]
  %16 = xla_tuple %s14, %s15
  %s17 = sld [smem:[#allocation0]]
  $region105: #{tpu_custom_call.1} parent=0
    _
  %s19 = ssub.s32 1, %s17
  %s20 = scalar_select 0, %s19, %s17
  $region1: #{tpu_custom_call.1} parent=0
    #allocation2 [shape = 'u8[8192]{0}', space=vmem, size = 0x2000, scoped, tag = 'input window, operand 0']
    #allocation3 [shape = 's32[2]{0}', space=sflag, size = 0x8, scoped, tag = 'scoped memory for tpu_custom_call.1']
    #allocation4 [shape = 's32[2]{0}', space=sflag, size = 0x8, scoped, tag = 'scoped memory for tpu_custom_call.1']
    #allocation5 [shape = 'u8[8192]{0}', space=vmem, size = 0x2000, scoped, tag = 'input window, operand 1']
    #allocation6 [shape = 's32[2]{0}', space=sflag, size = 0x8, scoped, tag = 'scoped memory for tpu_custom_call.1']
    #allocation7 [shape = 'u8[8192]{0}', space=vmem, size = 0x2000, scoped, tag = 'output window, operand 0']
    #allocation8 [shape = 'u8[32768]{0}', space=vmem, size = 0x8000, scoped, tag = 'output window, operand 1']
    #allocation9 [shape = 's32[2]{0}', space=sflag, size = 0x8, scoped, tag = 'scoped memory for tpu_custom_call.1']
    %21 = vsyncpa [#allocation3], 0
    %s22 = scalar_lea.sflag [#allocation3], 1
    %23 = vsyncpa %s22, 0
    %24 = vsyncpa [#allocation6], 0
    %s25 = scalar_lea.sflag [#allocation6], 1
    %26 = vsyncpa %s25, 0
    %27 = vsyncpa [#allocation4], 0
    %s28 = scalar_lea.sflag [#allocation4], 1
    %29 = vsyncpa %s28, 0
    %30 = vsyncpa [#allocation9], 0
    %s31 = scalar_lea.sflag [#allocation9], 1
    %32 = vsyncpa %s31, 0
    loop: start=0, step=1, limit=4
    $region2: #{tpu_custom_call.1} parent=1 // loop_pre_header
      _
    $region3: #{tpu_custom_call.1} parent=1 // loop_header
      %s34 = sphi 0, %s38
      %p35 = scmp.ge.s32.totalorder %s34, 4
      %s44 = sphi 0, %s46
      %s47 = sphi 0, %s44
      %s48 = sphi 0, %s47
      %s64 = sphi 0, %s48
      %s70 = sphi 0, %s72
      %s73 = sphi 0, %s70
      %s74 = sphi 0, %s73
      %s90 = sphi 0, %s74
      %s94 = sphi 0, %s94
      %s96 = sphi 0, %s94
      %s97 = sphi 0, %s96
      %s111 = sphi 0, %s97
      %s115 = sphi 0, %s115
      %s117 = sphi 0, %s115
      %s118 = sphi 0, %s117
      %s132 = sphi 0, %s118
      %s136 = sphi 0, %s136
      %s138 = sphi 0, %s136
      %s139 = sphi 0, %s138
      %s153 = sphi 0, %s139
      %s157 = sphi 0, %s157
      %s159 = sphi 0, %s157
      %s160 = sphi 0, %s159
      %s174 = sphi 0, %s160
      %s178 = sphi 0, %s178
      %s180 = sphi 0, %s178
      %s181 = sphi 0, %s180
      %s195 = sphi 0, %s181
      %s199 = sphi 0, %s199
      %s201 = sphi 0, %s199
      %s202 = sphi 0, %s201
      %s216 = sphi 0, %s202
      %s220 = sphi 0, %s220
      %s222 = sphi 0, %s220
      %s223 = sphi 0, %s222
      %s237 = sphi 0, %s223
      %s241 = sphi 0, %s241
      %s243 = sphi 0, %s241
      %s244 = sphi 0, %s243
      %s258 = sphi 0, %s244
      %s262 = sphi 0, %s262
      %s264 = sphi 0, %s262
      %s265 = sphi 0, %s264
      %s279 = sphi 0, %s265
      %s283 = sphi 0, %s283
      %s285 = sphi 0, %s283
      %s286 = sphi 0, %s285
      %s300 = sphi 0, %s286
      %s304 = sphi 0, %s304
      %s306 = sphi 0, %s304
      %s307 = sphi 0, %s306
      %s321 = sphi 0, %s307
      %s325 = sphi 0, %s325
      %s327 = sphi 0, %s325
      %s328 = sphi 0, %s327
      %s342 = sphi 0, %s328
      %s348 = sphi 0, %s350
      %s351 = sphi 0, %s348
      %s352 = sphi 0, %s351
      %s368 = sphi 0, %s352
      %s374 = sphi 0, %s376
      %s377 = sphi 0, %s374
      %s378 = sphi 0, %s377
      %s394 = sphi 0, %s378
    $region4: #{tpu_custom_call.1} parent=1 // loop_header_branch
      %37 = sbr.rel (%p35) target = $region8
    $region5: #{tpu_custom_call.1} parent=1 // loop_body
      %s39 = ssub.s32 %s34, 1
      %s40 = ssub.s32 %s34, 2
      %s41 = sadd.s32 %s34, 1
      %s42 = ssub.s32 %s34, %s41
      %p43 = scmp.eq.s32.totalorder %s42, 0
      %s45 = sadd.s32 %s44, 1
      %s46 = scalar_select %p43, %s44, %s45
      %p49 = pneg %p43
      %p50 = scmp.eq.s32.totalorder %s34, 1
      %p51 = por %p49, %p50
      %p52 = scmp.ne.s32.totalorder %s44, %s47
      %p53 = scmp.eq.s32.totalorder %s34, 0
      %p54 = por %p52, %p53
      %p55 = scmp.ne.s32.totalorder %s44, %s47
      %p56 = scmp.eq.s32.totalorder %s39, 1
      %p57 = por %p55, %p56
      %p58 = scmp.ne.s32.totalorder %s47, %s48
      %p59 = scmp.eq.s32.totalorder %s39, 0
      %p60 = por %p58, %p59
      %p61 = scmp.ne.s32.totalorder %s47, %s48
      %p62 = scmp.eq.s32.totalorder %s40, 1
      %p63 = por %p61, %p62
      %p65 = scmp.ne.s32.totalorder %s48, %s64
      %p66 = scmp.eq.s32.totalorder %s40, 0
      %p67 = por %p65, %p66
      %s68 = ssub.s32 %s34, %s41
      %p69 = scmp.eq.s32.totalorder %s68, 0
      %s71 = sadd.s32 %s70, 1
      %s72 = scalar_select %p69, %s70, %s71
      %p75 = pneg %p69
      %p76 = scmp.eq.s32.totalorder %s34, 1
      %p77 = por %p75, %p76
      %p78 = scmp.ne.s32.totalorder %s70, %s73
      %p79 = scmp.eq.s32.totalorder %s34, 0
      %p80 = por %p78, %p79
      %p81 = scmp.ne.s32.totalorder %s70, %s73
      %p82 = scmp.eq.s32.totalorder %s39, 1
      %p83 = por %p81, %p82
      %p84 = scmp.ne.s32.totalorder %s73, %s74
      %p85 = scmp.eq.s32.totalorder %s39, 0
      %p86 = por %p84, %p85
      %p87 = scmp.ne.s32.totalorder %s73, %s74
      %p88 = scmp.eq.s32.totalorder %s40, 1
      %p89 = por %p87, %p88
      %p91 = scmp.ne.s32.totalorder %s74, %s90
      %p92 = scmp.eq.s32.totalorder %s40, 0
      %p93 = por %p91, %p92
      %s95 = sadd.s32 %s94, 1
      %p98 = scmp.eq.s32.totalorder %s34, 1
      %p99 = scmp.ne.s32.totalorder %s94, %s96
      %p100 = scmp.eq.s32.totalorder %s34, 0
      %p101 = por %p99, %p100
      %p102 = scmp.ne.s32.totalorder %s94, %s96
      %p103 = scmp.eq.s32.totalorder %s39, 1
      %p104 = por %p102, %p103
      %p105 = scmp.ne.s32.totalorder %s96, %s97
      %p106 = scmp.eq.s32.totalorder %s39, 0
      %p107 = por %p105, %p106
      %p108 = scmp.ne.s32.totalorder %s96, %s97
      %p109 = scmp.eq.s32.totalorder %s40, 1
      %p110 = por %p108, %p109
      %p112 = scmp.ne.s32.totalorder %s97, %s111
      %p113 = scmp.eq.s32.totalorder %s40, 0
      %p114 = por %p112, %p113
      %s116 = sadd.s32 %s115, 1
      %p119 = scmp.eq.s32.totalorder %s34, 1
      %p120 = scmp.ne.s32.totalorder %s115, %s117
      %p121 = scmp.eq.s32.totalorder %s34, 0
      %p122 = por %p120, %p121
      %p123 = scmp.ne.s32.totalorder %s115, %s117
      %p124 = scmp.eq.s32.totalorder %s39, 1
      %p125 = por %p123, %p124
      %p126 = scmp.ne.s32.totalorder %s117, %s118
      %p127 = scmp.eq.s32.totalorder %s39, 0
      %p128 = por %p126, %p127
      %p129 = scmp.ne.s32.totalorder %s117, %s118
      %p130 = scmp.eq.s32.totalorder %s40, 1
      %p131 = por %p129, %p130
      %p133 = scmp.ne.s32.totalorder %s118, %s132
      %p134 = scmp.eq.s32.totalorder %s40, 0
      %p135 = por %p133, %p134
      %s137 = sadd.s32 %s136, 1
      %p140 = scmp.eq.s32.totalorder %s34, 1
      %p141 = scmp.ne.s32.totalorder %s136, %s138
      %p142 = scmp.eq.s32.totalorder %s34, 0
      %p143 = por %p141, %p142
      %p144 = scmp.ne.s32.totalorder %s136, %s138
      %p145 = scmp.eq.s32.totalorder %s39, 1
      %p146 = por %p144, %p145
      %p147 = scmp.ne.s32.totalorder %s138, %s139
      %p148 = scmp.eq.s32.totalorder %s39, 0
      %p149 = por %p147, %p148
      %p150 = scmp.ne.s32.totalorder %s138, %s139
      %p151 = scmp.eq.s32.totalorder %s40, 1
      %p152 = por %p150, %p151
      %p154 = scmp.ne.s32.totalorder %s139, %s153
      %p155 = scmp.eq.s32.totalorder %s40, 0
      %p156 = por %p154, %p155
      %s158 = sadd.s32 %s157, 1
      %p161 = scmp.eq.s32.totalorder %s34, 1
      %p162 = scmp.ne.s32.totalorder %s157, %s159
      %p163 = scmp.eq.s32.totalorder %s34, 0
      %p164 = por %p162, %p163
      %p165 = scmp.ne.s32.totalorder %s157, %s159
      %p166 = scmp.eq.s32.totalorder %s39, 1
      %p167 = por %p165, %p166
      %p168 = scmp.ne.s32.totalorder %s159, %s160
      %p169 = scmp.eq.s32.totalorder %s39, 0
      %p170 = por %p168, %p169
      %p171 = scmp.ne.s32.totalorder %s159, %s160
      %p172 = scmp.eq.s32.totalorder %s40, 1
      %p173 = por %p171, %p172
      %p175 = scmp.ne.s32.totalorder %s160, %s174
      %p176 = scmp.eq.s32.totalorder %s40, 0
      %p177 = por %p175, %p176
      %s179 = sadd.s32 %s178, 1
      %p182 = scmp.eq.s32.totalorder %s34, 1
      %p183 = scmp.ne.s32.totalorder %s178, %s180
      %p184 = scmp.eq.s32.totalorder %s34, 0
      %p185 = por %p183, %p184
      %p186 = scmp.ne.s32.totalorder %s178, %s180
      %p187 = scmp.eq.s32.totalorder %s39, 1
      %p188 = por %p186, %p187
      %p189 = scmp.ne.s32.totalorder %s180, %s181
      %p190 = scmp.eq.s32.totalorder %s39, 0
      %p191 = por %p189, %p190
      %p192 = scmp.ne.s32.totalorder %s180, %s181
      %p193 = scmp.eq.s32.totalorder %s40, 1
      %p194 = por %p192, %p193
      %p196 = scmp.ne.s32.totalorder %s181, %s195
      %p197 = scmp.eq.s32.totalorder %s40, 0
      %p198 = por %p196, %p197
      %s200 = sadd.s32 %s199, 1
      %p203 = scmp.eq.s32.totalorder %s34, 1
      %p204 = scmp.ne.s32.totalorder %s199, %s201
      %p205 = scmp.eq.s32.totalorder %s34, 0
      %p206 = por %p204, %p205
      %p207 = scmp.ne.s32.totalorder %s199, %s201
      %p208 = scmp.eq.s32.totalorder %s39, 1
      %p209 = por %p207, %p208
      %p210 = scmp.ne.s32.totalorder %s201, %s202
      %p211 = scmp.eq.s32.totalorder %s39, 0
      %p212 = por %p210, %p211
      %p213 = scmp.ne.s32.totalorder %s201, %s202
      %p214 = scmp.eq.s32.totalorder %s40, 1
      %p215 = por %p213, %p214
      %p217 = scmp.ne.s32.totalorder %s202, %s216
      %p218 = scmp.eq.s32.totalorder %s40, 0
      %p219 = por %p217, %p218
      %s221 = sadd.s32 %s220, 1
      %p224 = scmp.eq.s32.totalorder %s34, 1
      %p225 = scmp.ne.s32.totalorder %s220, %s222
      %p226 = scmp.eq.s32.totalorder %s34, 0
      %p227 = por %p225, %p226
      %p228 = scmp.ne.s32.totalorder %s220, %s222
      %p229 = scmp.eq.s32.totalorder %s39, 1
      %p230 = por %p228, %p229
      %p231 = scmp.ne.s32.totalorder %s222, %s223
      %p232 = scmp.eq.s32.totalorder %s39, 0
      %p233 = por %p231, %p232
      %p234 = scmp.ne.s32.totalorder %s222, %s223
      %p235 = scmp.eq.s32.totalorder %s40, 1
      %p236 = por %p234, %p235
      %p238 = scmp.ne.s32.totalorder %s223, %s237
      %p239 = scmp.eq.s32.totalorder %s40, 0
      %p240 = por %p238, %p239
      %s242 = sadd.s32 %s241, 1
      %p245 = scmp.eq.s32.totalorder %s34, 1
      %p246 = scmp.ne.s32.totalorder %s241, %s243
      %p247 = scmp.eq.s32.totalorder %s34, 0
      %p248 = por %p246, %p247
      %p249 = scmp.ne.s32.totalorder %s241, %s243
      %p250 = scmp.eq.s32.totalorder %s39, 1
      %p251 = por %p249, %p250
      %p252 = scmp.ne.s32.totalorder %s243, %s244
      %p253 = scmp.eq.s32.totalorder %s39, 0
      %p254 = por %p252, %p253
      %p255 = scmp.ne.s32.totalorder %s243, %s244
      %p256 = scmp.eq.s32.totalorder %s40, 1
      %p257 = por %p255, %p256
      %p259 = scmp.ne.s32.totalorder %s244, %s258
      %p260 = scmp.eq.s32.totalorder %s40, 0
      %p261 = por %p259, %p260
      %s263 = sadd.s32 %s262, 1
      %p266 = scmp.eq.s32.totalorder %s34, 1
      %p267 = scmp.ne.s32.totalorder %s262, %s264
      %p268 = scmp.eq.s32.totalorder %s34, 0
      %p269 = por %p267, %p268
      %p270 = scmp.ne.s32.totalorder %s262, %s264
      %p271 = scmp.eq.s32.totalorder %s39, 1
      %p272 = por %p270, %p271
      %p273 = scmp.ne.s32.totalorder %s264, %s265
      %p274 = scmp.eq.s32.totalorder %s39, 0
      %p275 = por %p273, %p274
      %p276 = scmp.ne.s32.totalorder %s264, %s265
      %p277 = scmp.eq.s32.totalorder %s40, 1
      %p278 = por %p276, %p277
      %p280 = scmp.ne.s32.totalorder %s265, %s279
      %p281 = scmp.eq.s32.totalorder %s40, 0
      %p282 = por %p280, %p281
      %s284 = sadd.s32 %s283, 1
      %p287 = scmp.eq.s32.totalorder %s34, 1
      %p288 = scmp.ne.s32.totalorder %s283, %s285
      %p289 = scmp.eq.s32.totalorder %s34, 0
      %p290 = por %p288, %p289
      %p291 = scmp.ne.s32.totalorder %s283, %s285
      %p292 = scmp.eq.s32.totalorder %s39, 1
      %p293 = por %p291, %p292
      %p294 = scmp.ne.s32.totalorder %s285, %s286
      %p295 = scmp.eq.s32.totalorder %s39, 0
      %p296 = por %p294, %p295
      %p297 = scmp.ne.s32.totalorder %s285, %s286
      %p298 = scmp.eq.s32.totalorder %s40, 1
      %p299 = por %p297, %p298
      %p301 = scmp.ne.s32.totalorder %s286, %s300
      %p302 = scmp.eq.s32.totalorder %s40, 0
      %p303 = por %p301, %p302
      %s305 = sadd.s32 %s304, 1
      %p308 = scmp.eq.s32.totalorder %s34, 1
      %p309 = scmp.ne.s32.totalorder %s304, %s306
      %p310 = scmp.eq.s32.totalorder %s34, 0
      %p311 = por %p309, %p310
      %p312 = scmp.ne.s32.totalorder %s304, %s306
      %p313 = scmp.eq.s32.totalorder %s39, 1
      %p314 = por %p312, %p313
      %p315 = scmp.ne.s32.totalorder %s306, %s307
      %p316 = scmp.eq.s32.totalorder %s39, 0
      %p317 = por %p315, %p316
      %p318 = scmp.ne.s32.totalorder %s306, %s307
      %p319 = scmp.eq.s32.totalorder %s40, 1
      %p320 = por %p318, %p319
      %p322 = scmp.ne.s32.totalorder %s307, %s321
      %p323 = scmp.eq.s32.totalorder %s40, 0
      %p324 = por %p322, %p323
      %s326 = sadd.s32 %s325, 1
      %p329 = scmp.eq.s32.totalorder %s34, 1
      %p330 = scmp.ne.s32.totalorder %s325, %s327
      %p331 = scmp.eq.s32.totalorder %s34, 0
      %p332 = por %p330, %p331
      %p333 = scmp.ne.s32.totalorder %s325, %s327
      %p334 = scmp.eq.s32.totalorder %s39, 1
      %p335 = por %p333, %p334
      %p336 = scmp.ne.s32.totalorder %s327, %s328
      %p337 = scmp.eq.s32.totalorder %s39, 0
      %p338 = por %p336, %p337
      %p339 = scmp.ne.s32.totalorder %s327, %s328
      %p340 = scmp.eq.s32.totalorder %s40, 1
      %p341 = por %p339, %p340
      %p343 = scmp.ne.s32.totalorder %s328, %s342
      %p344 = scmp.eq.s32.totalorder %s40, 0
      %p345 = por %p343, %p344
      %s346 = ssub.s32 %s34, %s41
      %p347 = scmp.eq.s32.totalorder %s346, 0
      %s349 = sadd.s32 %s348, 1
      %s350 = scalar_select %p347, %s348, %s349
      %p353 = pneg %p347
      %p354 = scmp.eq.s32.totalorder %s34, 1
      %p355 = por %p353, %p354
      %p356 = scmp.ne.s32.totalorder %s348, %s351
      %p357 = scmp.eq.s32.totalorder %s34, 0
      %p358 = por %p356, %p357
      %p359 = scmp.ne.s32.totalorder %s348, %s351
      %p360 = scmp.eq.s32.totalorder %s39, 1
      %p361 = por %p359, %p360
      %p362 = scmp.ne.s32.totalorder %s351, %s352
      %p363 = scmp.eq.s32.totalorder %s39, 0
      %p364 = por %p362, %p363
      %p365 = scmp.ne.s32.totalorder %s351, %s352
      %p366 = scmp.eq.s32.totalorder %s40, 1
      %p367 = por %p365, %p366
      %p369 = scmp.ne.s32.totalorder %s352, %s368
      %p370 = scmp.eq.s32.totalorder %s40, 0
      %p371 = por %p369, %p370
      %s372 = ssub.s32 %s34, %s41
      %p373 = scmp.eq.s32.totalorder %s372, 0
      %s375 = sadd.s32 %s374, 1
      %s376 = scalar_select %p373, %s374, %s375
      %p379 = pneg %p373
      %p380 = scmp.eq.s32.totalorder %s34, 1
      %p381 = por %p379, %p380
      %p382 = scmp.ne.s32.totalorder %s374, %s377
      %p383 = scmp.eq.s32.totalorder %s34, 0
      %p384 = por %p382, %p383
      %p385 = scmp.ne.s32.totalorder %s374, %s377
      %p386 = scmp.eq.s32.totalorder %s39, 1
      %p387 = por %p385, %p386
      %p388 = scmp.ne.s32.totalorder %s377, %s378
      %p389 = scmp.eq.s32.totalorder %s39, 0
      %p390 = por %p388, %p389
      %p391 = scmp.ne.s32.totalorder %s377, %s378
      %p392 = scmp.eq.s32.totalorder %s40, 1
      %p393 = por %p391, %p392
      %p395 = scmp.ne.s32.totalorder %s378, %s394
      %p396 = scmp.eq.s32.totalorder %s40, 0
      %p397 = por %p395, %p396
      %p398 = scmp.le.s32.totalorder 1, %s34
      %p399 = scmp.lt.s32.totalorder %s34, 3
      %p400 = pnand %p398, %p399
      %p401 = pneg %p400
      // Predicated region
      $region9: #{tpu_custom_call.1} parent=5 // pred_check
        _
      $region10: #{tpu_custom_call.1} parent=5 // pred_check_branch
        %403 = sbr.rel (%p400) target = $region12
      $region11: #{tpu_custom_call.1} parent=5 // pred_region
        %s404 = ssub.s32 %s34, 1
        // Predicated region
        $region13: #{tpu_custom_call.1} parent=11 // pred_check
          %p405 = pneg %p107
        $region14: #{tpu_custom_call.1} parent=11 // pred_check_branch
          %407 = sbr.rel (%p405) target = $region16
        $region15: #{tpu_custom_call.1} parent=11 // pred_region
          _
        $region16: #{tpu_custom_call.1} parent=11 // pred_fallthru
          _
        // Predicated region
        $region17: #{tpu_custom_call.1} parent=11 // pred_check
          %p408 = pneg %p128
        $region18: #{tpu_custom_call.1} parent=11 // pred_check_branch
          %410 = sbr.rel (%p408) target = $region20
        $region19: #{tpu_custom_call.1} parent=11 // pred_region
          _
        $region20: #{tpu_custom_call.1} parent=11 // pred_fallthru
          _
        // Predicated region
        $region21: #{tpu_custom_call.1} parent=11 // pred_check
          %p411 = pneg %p149
        $region22: #{tpu_custom_call.1} parent=11 // pred_check_branch
          %413 = sbr.rel (%p411) target = $region24
        $region23: #{tpu_custom_call.1} parent=11 // pred_region
          _
        $region24: #{tpu_custom_call.1} parent=11 // pred_fallthru
          _
        // Predicated region
        $region25: #{tpu_custom_call.1} parent=11 // pred_check
          %p414 = pneg %p170
        $region26: #{tpu_custom_call.1} parent=11 // pred_check_branch
          %416 = sbr.rel (%p414) target = $region28
        $region27: #{tpu_custom_call.1} parent=11 // pred_region
          _
        $region28: #{tpu_custom_call.1} parent=11 // pred_fallthru
          _
        // Predicated region
        $region29: #{tpu_custom_call.1} parent=11 // pred_check
          %p417 = pneg %p191
        $region30: #{tpu_custom_call.1} parent=11 // pred_check_branch
          %419 = sbr.rel (%p417) target = $region32
        $region31: #{tpu_custom_call.1} parent=11 // pred_region
          _
        $region32: #{tpu_custom_call.1} parent=11 // pred_fallthru
          _
        // Predicated region
        $region33: #{tpu_custom_call.1} parent=11 // pred_check
          %p420 = pneg %p212
        $region34: #{tpu_custom_call.1} parent=11 // pred_check_branch
          %422 = sbr.rel (%p420) target = $region36
        $region35: #{tpu_custom_call.1} parent=11 // pred_region
          _
        $region36: #{tpu_custom_call.1} parent=11 // pred_fallthru
          _
        // Predicated region
        $region37: #{tpu_custom_call.1} parent=11 // pred_check
          %p423 = pneg %p233
        $region38: #{tpu_custom_call.1} parent=11 // pred_check_branch
          %425 = sbr.rel (%p423) target = $region40
        $region39: #{tpu_custom_call.1} parent=11 // pred_region
          _
        $region40: #{tpu_custom_call.1} parent=11 // pred_fallthru
          _
        // Predicated region
        $region41: #{tpu_custom_call.1} parent=11 // pred_check
          %p426 = pneg %p254
        $region42: #{tpu_custom_call.1} parent=11 // pred_check_branch
          %428 = sbr.rel (%p426) target = $region44
        $region43: #{tpu_custom_call.1} parent=11 // pred_region
          _
        $region44: #{tpu_custom_call.1} parent=11 // pred_fallthru
          _
        // Predicated region
        $region45: #{tpu_custom_call.1} parent=11 // pred_check
          %p429 = pneg %p275
        $region46: #{tpu_custom_call.1} parent=11 // pred_check_branch
          %431 = sbr.rel (%p429) target = $region48
        $region47: #{tpu_custom_call.1} parent=11 // pred_region
          _
        $region48: #{tpu_custom_call.1} parent=11 // pred_fallthru
          _
        // Predicated region
        $region49: #{tpu_custom_call.1} parent=11 // pred_check
          %p432 = pneg %p296
        $region50: #{tpu_custom_call.1} parent=11 // pred_check_branch
          %434 = sbr.rel (%p432) target = $region52
        $region51: #{tpu_custom_call.1} parent=11 // pred_region
          _
        $region52: #{tpu_custom_call.1} parent=11 // pred_fallthru
          _
        // Predicated region
        $region53: #{tpu_custom_call.1} parent=11 // pred_check
          %p435 = pneg %p317
        $region54: #{tpu_custom_call.1} parent=11 // pred_check_branch
          %437 = sbr.rel (%p435) target = $region56
        $region55: #{tpu_custom_call.1} parent=11 // pred_region
          _
        $region56: #{tpu_custom_call.1} parent=11 // pred_fallthru
          _
        // Predicated region
        $region57: #{tpu_custom_call.1} parent=11 // pred_check
          %p438 = pneg %p338
        $region58: #{tpu_custom_call.1} parent=11 // pred_check_branch
          %440 = sbr.rel (%p438) target = $region60
        $region59: #{tpu_custom_call.1} parent=11 // pred_region
          _
        $region60: #{tpu_custom_call.1} parent=11 // pred_fallthru
          _
      $region12: #{tpu_custom_call.1} parent=5 // pred_fallthru
        _
      %p441 = scmp.lt.s32.totalorder %s34, 2
      // Predicated region
      $region61: #{tpu_custom_call.1} parent=5 // pred_check
        %p442 = pneg %p441
      $region62: #{tpu_custom_call.1} parent=5 // pred_check_branch
        %444 = sbr.rel (%p442) target = $region64
      $region63: #{tpu_custom_call.1} parent=5 // pred_region
        // Predicated region
        $region65: #{tpu_custom_call.1} parent=63 // pred_check
          %p445 = pneg %p54
        $region66: #{tpu_custom_call.1} parent=63 // pred_check_branch
          %447 = sbr.rel (%p445) target = $region68
        $region67: #{tpu_custom_call.1} parent=63 // pred_region
          %s448 = sand.u32 %s44, 1
          %s449 = scalar_lea.sflag [#allocation3], %s448
          %s450 = sand.u32 %s44, 1
          %s451 = smul.addr %s450, 8
          %s452 = scalar_lea.vmem [#allocation2], %s451
          %s454 = ssub.s32 128, 128
          %455 = vsyncadd %s449, %s454
          %s456 = smul.addr %s34, 128
          %s457 = scalar_lea.hbm %s0, %s456
          %s459 = sshll.u32 %s452, 4
          %s460 = int_to_ptr.vmem [resolvable:$true] %s459
          %462 = dma.hbm_to_vmem [thread:$0]  %s457, 128, %s460, %s449
        $region68: #{tpu_custom_call.1} parent=63 // pred_fallthru
          _
        // Predicated region
        $region69: #{tpu_custom_call.1} parent=63 // pred_check
          %p463 = pneg %p80
        $region70: #{tpu_custom_call.1} parent=63 // pred_check_branch
          %465 = sbr.rel (%p463) target = $region72
        $region71: #{tpu_custom_call.1} parent=63 // pred_region
          %s466 = sand.u32 %s70, 1
          %s467 = scalar_lea.sflag [#allocation6], %s466
          %s468 = sand.u32 %s70, 1
          %s469 = smul.addr %s468, 8
          %s470 = scalar_lea.vmem [#allocation5], %s469
          %s472 = ssub.s32 128, 128
          %473 = vsyncadd %s467, %s472
          %s474 = smul.addr %s34, 128
          %s475 = scalar_lea.hbm %s1, %s474
          %s477 = sshll.u32 %s470, 4
          %s478 = int_to_ptr.vmem [resolvable:$true] %s477
          %480 = dma.hbm_to_vmem [thread:$0]  %s475, 128, %s478, %s467
        $region72: #{tpu_custom_call.1} parent=63 // pred_fallthru
          _
      $region64: #{tpu_custom_call.1} parent=5 // pred_fallthru
        _
      %p481 = scmp.le.s32.totalorder 1, %s34
      %p482 = scmp.lt.s32.totalorder %s34, 3
      %p483 = pnand %p481, %p482
      %p484 = pneg %p483
      // Predicated region
      $region73: #{tpu_custom_call.1} parent=5 // pred_check
        _
      $region74: #{tpu_custom_call.1} parent=5 // pred_check_branch
        %486 = sbr.rel (%p483) target = $region76
      $region75: #{tpu_custom_call.1} parent=5 // pred_region
        %s487 = ssub.s32 %s34, 1
        %s488 = sand.u32 %s47, 1
        %s489 = scalar_lea.sflag [#allocation3], %s488
        %s490 = sand.u32 %s47, 1
        %s491 = smul.addr %s490, 8
        %s492 = scalar_lea.vmem [#allocation2], %s491
        // Predicated region
        $region77: #{tpu_custom_call.1} parent=75 // pred_check
          %p493 = pneg %p60
        $region78: #{tpu_custom_call.1} parent=75 // pred_check_branch
          %495 = sbr.rel (%p493) target = $region80
        $region79: #{tpu_custom_call.1} parent=75 // pred_region
          %496 = dma.done %s489, 128
        $region80: #{tpu_custom_call.1} parent=75 // pred_fallthru
          _
        %s497 = sand.u32 %s73, 1
        %s498 = scalar_lea.sflag [#allocation6], %s497
        %s499 = sand.u32 %s73, 1
        %s500 = smul.addr %s499, 8
        %s501 = scalar_lea.vmem [#allocation5], %s500
        // Predicated region
        $region81: #{tpu_custom_call.1} parent=75 // pred_check
          %p502 = pneg %p86
        $region82: #{tpu_custom_call.1} parent=75 // pred_check_branch
          %504 = sbr.rel (%p502) target = $region84
        $region83: #{tpu_custom_call.1} parent=75 // pred_region
          %505 = dma.done %s498, 128
        $region84: #{tpu_custom_call.1} parent=75 // pred_fallthru
          _
        %s506 = sand.u32 %s47, 1
        %s507 = scalar_lea.sflag [#allocation3], %s506
        %s508 = sand.u32 %s47, 1
        %s509 = smul.addr %s508, 8
        %s510 = scalar_lea.vmem [#allocation2], %s509
        %p511 = pneg %p60
        %p512 = pneg %p57
        %s513 = sand.u32 %s73, 1
        %s514 = scalar_lea.sflag [#allocation6], %s513
        %s515 = sand.u32 %s73, 1
        %s516 = smul.addr %s515, 8
        %s517 = scalar_lea.vmem [#allocation5], %s516
        %p518 = pneg %p86
        %p519 = pneg %p83
        %p520 = pneg %p107
        %p521 = pneg %p104
        %p522 = pneg %p128
        %p523 = pneg %p125
        %p524 = pneg %p149
        %p525 = pneg %p146
        %p526 = pneg %p170
        %p527 = pneg %p167
        %p528 = pneg %p191
        %p529 = pneg %p188
        %p530 = pneg %p212
        %p531 = pneg %p209
        %p532 = pneg %p233
        %p533 = pneg %p230
        %p534 = pneg %p254
        %p535 = pneg %p251
        %p536 = pneg %p275
        %p537 = pneg %p272
        %p538 = pneg %p296
        %p539 = pneg %p293
        %p540 = pneg %p317
        %p541 = pneg %p314
        %p542 = pneg %p338
        %p543 = pneg %p335
        %p544 = pneg %p364
        %p545 = pneg %p361
        %s546 = sand.u32 %s351, 1
        %s547 = scalar_lea.sflag [#allocation4], %s546
        %s548 = sand.u32 %s351, 1
        %s549 = smul.addr %s548, 8
        %s550 = scalar_lea.vmem [#allocation7], %s549
        %p551 = pneg %p390
        %p552 = pneg %p387
        %s553 = sand.u32 %s377, 1
        %s554 = scalar_lea.sflag [#allocation9], %s553
        %s555 = sand.u32 %s377, 1
        %s556 = smul.addr %s555, 32
        %s557 = scalar_lea.vmem [#allocation8], %s556
        %v558 = vld [vmem:[%s492] sm:$0xff]
        %v559 = vld [vmem:[%s501] sm:$0xff]
        %vm560 = vcmp.ne.s32.totalorder %v559, 0
        %v561 = vld [vmem:[%s2] sm:$0xff]
        %v562 = vld [vmem:[%s2 + $0x8] sm:$0xff]
        %v563 = vld [vmem:[%s2 + $0x10] sm:$0xff]
        %v564 = vld [vmem:[%s2 + $0x18] sm:$0xff]
        %v565 = vld [vmem:[%s3] sm:$0x1]
        %v567 = vlaneseq
        %v568 = vshrl.u32 %v567, 7
        %v569 = vsub.s32 0, %v568
        %v570 = vrot.slane %v565, %v569
        %vm572 = vcmask 261120
        %v574 = vsel %vm572, %v558, 0
        %576 = vmatprep.subr.mxu0 0.0
        %577 = vmatpush1.msra.mxu0 %v561
        %578 = vmatprep.subr.mxu0 0.0
        %579 = vmatpush1.msra.mxu0 %v562
        %580 = vmatprep.subr.mxu0 0.0
        %581 = vmatpush1.msra.mxu0 %v563
        %582 = vmatprep.subr.mxu0 0.0
        %583 = vmatpush1.msra.mxu0 %v564
        %584 = vmatprep.subr.mxu0 0.0
        %585 = vmatpush1.msra.mxu0 0.0
        %586 = vmatprep.subr.mxu0 0.0
        %587 = vmatpush1.msra.mxu0 0.0
        %588 = vmatprep.subr.mxu0 0.0
        %589 = vmatpush1.msra.mxu0 0.0
        %590 = vmatprep.subr.mxu0 0.0
        %591 = vmatpush1.msra.mxu0 0.0
        %592 = vmatprep.subr.mxu0 0.0
        %593 = vmatpush1.msra.mxu0 0.0
        %594 = vmatprep.subr.mxu0 0.0
        %595 = vmatpush1.msra.mxu0 0.0
        %596 = vmatprep.subr.mxu0 0.0
        %597 = vmatpush1.msra.mxu0 0.0
        %598 = vmatprep.subr.mxu0 0.0
        %599 = vmatpush1.msra.mxu0 0.0
        %600 = vmatprep.subr.mxu0 0.0
        %601 = vmatpush1.msra.mxu0 0.0
        %602 = vmatprep.subr.mxu0 0.0
        %603 = vmatpush1.msra.mxu0 0.0
        %604 = vmatprep.subr.mxu0 0.0
        %605 = vmatpush1.msra.mxu0 0.0
        %606 = vmatprep.subr.mxu0 0.0
        %607 = vmatpush1.msra.mxu0 0.0
        %608 = vmatprep.subr.mxu0 0.0
        %609 = vmatpush1.msra.mxu0 0.0
        %610 = vmatprep.subr.mxu0 0.0
        %611 = vmatpush1.msra.mxu0 0.0
        %612 = vmatprep.subr.mxu0 0.0
        %613 = vmatpush1.msra.mxu0 0.0
        %614 = vmatprep.subr.mxu0 0.0
        %615 = vmatpush1.msra.mxu0 0.0
        %616 = vmatprep.subr.mxu0 0.0
        %617 = vmatpush1.msra.mxu0 0.0
        %618 = vmatprep.subr.mxu0 0.0
        %619 = vmatpush1.msra.mxu0 0.0
        %620 = vmatprep.subr.mxu0 0.0
        %621 = vmatpush1.msra.mxu0 0.0
        %622 = vmatprep.subr.mxu0 0.0
        %623 = vmatpush1.msra.mxu0 0.0
        %624 = vmatprep.subr.mxu0 0.0
        %625 = vmatpush1.msra.mxu0 0.0
        %626 = vmatprep.subr.mxu0 0.0
        %627 = vmatpush1.msra.mxu0 0.0
        %628 = vmatprep.subr.mxu0 0.0
        %629 = vmatpush1.msra.mxu0 0.0
        %630 = vmatprep.subr.mxu0 0.0
        %631 = vmatpush1.msra.mxu0 0.0
        %632 = vmatprep.subr.mxu0 0.0
        %633 = vmatpush1.msra.mxu0 0.0
        %634 = vmatprep.subr.mxu0 0.0
        %635 = vmatpush1.msra.mxu0 0.0
        %636 = vmatprep.subr.mxu0 0.0
        %637 = vmatpush1.msra.mxu0 0.0
        %638 = vmatprep.subr.mxu0 0.0
        %639 = vmatpush1.msra.mxu0 0.0
        %640 = vmatprep.mubr.f32.mxu0 0.0
        %641 = vmatmul.mubr.f32.gmra.mrb[0].mxu0 %v574
        %v642 = vpop.f32.mrb[0].mxu0
        %v643 = vadd.f32 %v570, %v642
        %v644 = vpop.f32.mrb[0].mxu0
        %645 = vdwg.mxu0
        %647 = vrot.lane.b32.xlu0 %v643, 96
        %v648 = vpop.permute.xlu0 %647
        %vm649 = vcmask 64512
        %v650 = vsel %vm649, %v643, 0
        %v652 = vsel %vm649, %v648, 0
        %654 = vmatprep.subr.mxu0 0.0
        %655 = vmatpush1.xpose.msra.mxu0 %v652
        %656 = vmatprep.subr.mxu0 0.0
        %657 = vmatpush1.xpose.msra.mxu0 0.0
        %658 = vmatprep.subr.mxu0 0.0
        %659 = vmatpush1.xpose.msra.mxu0 0.0
        %660 = vmatprep.subr.mxu0 0.0
        %661 = vmatpush1.xpose.msra.mxu0 0.0
        %662 = vmatprep.subr.mxu0 0.0
        %663 = vmatpush1.xpose.msra.mxu0 0.0
        %664 = vmatprep.subr.mxu0 0.0
        %665 = vmatpush1.xpose.msra.mxu0 0.0
        %666 = vmatprep.subr.mxu0 0.0
        %667 = vmatpush1.xpose.msra.mxu0 0.0
        %668 = vmatprep.subr.mxu0 0.0
        %669 = vmatpush1.xpose.msra.mxu0 0.0
        %670 = vmatprep.subr.mxu0 0.0
        %671 = vmatpush1.xpose.msra.mxu0 0.0
        %672 = vmatprep.subr.mxu0 0.0
        %673 = vmatpush1.xpose.msra.mxu0 0.0
        %674 = vmatprep.subr.mxu0 0.0
        %675 = vmatpush1.xpose.msra.mxu0 0.0
        %676 = vmatprep.subr.mxu0 0.0
        %677 = vmatpush1.xpose.msra.mxu0 0.0
        %678 = vmatprep.subr.mxu0 0.0
        %679 = vmatpush1.xpose.msra.mxu0 0.0
        %680 = vmatprep.subr.mxu0 0.0
        %681 = vmatpush1.xpose.msra.mxu0 0.0
        %682 = vmatprep.subr.mxu0 0.0
        %683 = vmatpush1.xpose.msra.mxu0 0.0
        %684 = vmatprep.subr.mxu0 0.0
        %685 = vmatpush1.xpose.msra.mxu0 0.0
        %686 = vmatprep.subr.mxu0 0.0
        %687 = vmatpush1.xpose.msra.mxu0 0.0
        %688 = vmatprep.subr.mxu0 0.0
        %689 = vmatpush1.xpose.msra.mxu0 0.0
        %690 = vmatprep.subr.mxu0 0.0
        %691 = vmatpush1.xpose.msra.mxu0 0.0
        %692 = vmatprep.subr.mxu0 0.0
        %693 = vmatpush1.xpose.msra.mxu0 0.0
        %694 = vmatprep.subr.mxu0 0.0
        %695 = vmatpush1.xpose.msra.mxu0 0.0
        %696 = vmatprep.subr.mxu0 0.0
        %697 = vmatpush1.xpose.msra.mxu0 0.0
        %698 = vmatprep.subr.mxu0 0.0
        %699 = vmatpush1.xpose.msra.mxu0 0.0
        %700 = vmatprep.subr.mxu0 0.0
        %701 = vmatpush1.xpose.msra.mxu0 0.0
        %702 = vmatprep.subr.mxu0 0.0
        %703 = vmatpush1.xpose.msra.mxu0 0.0
        %704 = vmatprep.subr.mxu0 0.0
        %705 = vmatpush1.xpose.msra.mxu0 0.0
        %706 = vmatprep.subr.mxu0 0.0
        %707 = vmatpush1.xpose.msra.mxu0 0.0
        %708 = vmatprep.subr.mxu0 0.0
        %709 = vmatpush1.xpose.msra.mxu0 0.0
        %710 = vmatprep.subr.mxu0 0.0
        %711 = vmatpush1.xpose.msra.mxu0 0.0
        %712 = vmatprep.subr.mxu0 0.0
        %713 = vmatpush1.xpose.msra.mxu0 0.0
        %714 = vmatprep.subr.mxu0 0.0
        %715 = vmatpush1.xpose.msra.mxu0 0.0
        %716 = vmatprep.subr.mxu0 0.0
        %717 = vmatpush1.xpose.msra.mxu0 0.0
        %718 = vmatprep.mubr.f32.mxu0 0.0
        %719 = vmatmul.mubr.f32.gmra.mrb[0].mxu0 %v650
        %v720 = vpop.f32.mrb[0].mxu0
        %v721 = vadd.f32 0.0, %v720
        %v722 = vpop.f32.mrb[0].mxu0
        %723 = vdwg.mxu0
        %v724 = vsel %vm560, -1e+09, %v721
        %v725 = vsel %vm649, %v724, -inf
        %726 = vmax.xlane.f32.xlu0 %v725
        %v727 = vpop.xlane.xlu0 %726
        %v728 = vsub.f32 %v724, %v727
        %v729 = vmul.f32 %v728, 1.442695
        %v730 = vpow.pop %v729
        %v731 = vsel %vm649, %v730, 0.0
        %732 = vadd.xlane.f32.xlu0 %v731
        %v733 = vpop.xlane.xlu0 %732
        %v734 = vrcp.pop %v733
        %v735 = vmul.f32 %v730, %v734
        %736 = vst.msk [vmem:[%s557] sm:$0xff] %vm649, %v735
        %737 = vrot.lane.b32.xlu0 %v643, 64
        %v738 = vpop.permute.xlu0 %737
        %v741 = vsel %vm649, %v735, 0
        %743 = vmatprep.subr.mxu0 0.0
        %744 = vmatpush1.msra.mxu0 %v738
        %745 = vmatprep.subr.mxu0 0.0
        %746 = vmatpush1.msra.mxu0 0.0
        %747 = vmatprep.subr.mxu0 0.0
        %748 = vmatpush1.msra.mxu0 0.0
        %749 = vmatprep.subr.mxu0 0.0
        %750 = vmatpush1.msra.mxu0 0.0
        %751 = vmatprep.subr.mxu0 0.0
        %752 = vmatpush1.msra.mxu0 0.0
        %753 = vmatprep.subr.mxu0 0.0
        %754 = vmatpush1.msra.mxu0 0.0
        %755 = vmatprep.subr.mxu0 0.0
        %756 = vmatpush1.msra.mxu0 0.0
        %757 = vmatprep.subr.mxu0 0.0
        %758 = vmatpush1.msra.mxu0 0.0
        %759 = vmatprep.subr.mxu0 0.0
        %760 = vmatpush1.msra.mxu0 0.0
        %761 = vmatprep.subr.mxu0 0.0
        %762 = vmatpush1.msra.mxu0 0.0
        %763 = vmatprep.subr.mxu0 0.0
        %764 = vmatpush1.msra.mxu0 0.0
        %765 = vmatprep.subr.mxu0 0.0
        %766 = vmatpush1.msra.mxu0 0.0
        %767 = vmatprep.subr.mxu0 0.0
        %768 = vmatpush1.msra.mxu0 0.0
        %769 = vmatprep.subr.mxu0 0.0
        %770 = vmatpush1.msra.mxu0 0.0
        %771 = vmatprep.subr.mxu0 0.0
        %772 = vmatpush1.msra.mxu0 0.0
        %773 = vmatprep.subr.mxu0 0.0
        %774 = vmatpush1.msra.mxu0 0.0
        %775 = vmatprep.subr.mxu0 0.0
        %776 = vmatpush1.msra.mxu0 0.0
        %777 = vmatprep.subr.mxu0 0.0
        %778 = vmatpush1.msra.mxu0 0.0
        %779 = vmatprep.subr.mxu0 0.0
        %780 = vmatpush1.msra.mxu0 0.0
        %781 = vmatprep.subr.mxu0 0.0
        %782 = vmatpush1.msra.mxu0 0.0
        %783 = vmatprep.subr.mxu0 0.0
        %784 = vmatpush1.msra.mxu0 0.0
        %785 = vmatprep.subr.mxu0 0.0
        %786 = vmatpush1.msra.mxu0 0.0
        %787 = vmatprep.subr.mxu0 0.0
        %788 = vmatpush1.msra.mxu0 0.0
        %789 = vmatprep.subr.mxu0 0.0
        %790 = vmatpush1.msra.mxu0 0.0
        %791 = vmatprep.subr.mxu0 0.0
        %792 = vmatpush1.msra.mxu0 0.0
        %793 = vmatprep.subr.mxu0 0.0
        %794 = vmatpush1.msra.mxu0 0.0
        %795 = vmatprep.subr.mxu0 0.0
        %796 = vmatpush1.msra.mxu0 0.0
        %797 = vmatprep.subr.mxu0 0.0
        %798 = vmatpush1.msra.mxu0 0.0
        %799 = vmatprep.subr.mxu0 0.0
        %800 = vmatpush1.msra.mxu0 0.0
        %801 = vmatprep.subr.mxu0 0.0
        %802 = vmatpush1.msra.mxu0 0.0
        %803 = vmatprep.subr.mxu0 0.0
        %804 = vmatpush1.msra.mxu0 0.0
        %805 = vmatprep.subr.mxu0 0.0
        %806 = vmatpush1.msra.mxu0 0.0
        %807 = vmatprep.mubr.f32.mxu0 0.0
        %808 = vmatmul.mubr.f32.gmra.mrb[0].mxu0 %v741
        %v809 = vpop.f32.mrb[0].mxu0
        %v810 = vadd.f32 0.0, %v809
        %v811 = vpop.f32.mrb[0].mxu0
        %812 = vdwg.mxu0
        %v813 = vld [vmem:[%s4] sm:$0xff]
        %814 = vrot.lane.b32.xlu0 %v643, 120
        %v815 = vpop.permute.xlu0 %814
        %816 = vrot.lane.b32.xlu0 %v643, 88
        %v817 = vpop.permute.xlu0 %816
        %v818 = vsel %vm649, %v815, 0
        %v820 = vsel %vm649, %v817, 0
        %822 = vmatprep.subr.mxu0 0.0
        %823 = vmatpush1.xpose.msra.mxu0 %v820
        %824 = vmatprep.subr.mxu0 0.0
        %825 = vmatpush1.xpose.msra.mxu0 0.0
        %826 = vmatprep.subr.mxu0 0.0
        %827 = vmatpush1.xpose.msra.mxu0 0.0
        %828 = vmatprep.subr.mxu0 0.0
        %829 = vmatpush1.xpose.msra.mxu0 0.0
        %830 = vmatprep.subr.mxu0 0.0
        %831 = vmatpush1.xpose.msra.mxu0 0.0
        %832 = vmatprep.subr.mxu0 0.0
        %833 = vmatpush1.xpose.msra.mxu0 0.0
        %834 = vmatprep.subr.mxu0 0.0
        %835 = vmatpush1.xpose.msra.mxu0 0.0
        %836 = vmatprep.subr.mxu0 0.0
        %837 = vmatpush1.xpose.msra.mxu0 0.0
        %838 = vmatprep.subr.mxu0 0.0
        %839 = vmatpush1.xpose.msra.mxu0 0.0
        %840 = vmatprep.subr.mxu0 0.0
        %841 = vmatpush1.xpose.msra.mxu0 0.0
        %842 = vmatprep.subr.mxu0 0.0
        %843 = vmatpush1.xpose.msra.mxu0 0.0
        %844 = vmatprep.subr.mxu0 0.0
        %845 = vmatpush1.xpose.msra.mxu0 0.0
        %846 = vmatprep.subr.mxu0 0.0
        %847 = vmatpush1.xpose.msra.mxu0 0.0
        %848 = vmatprep.subr.mxu0 0.0
        %849 = vmatpush1.xpose.msra.mxu0 0.0
        %850 = vmatprep.subr.mxu0 0.0
        %851 = vmatpush1.xpose.msra.mxu0 0.0
        %852 = vmatprep.subr.mxu0 0.0
        %853 = vmatpush1.xpose.msra.mxu0 0.0
        %854 = vmatprep.subr.mxu0 0.0
        %855 = vmatpush1.xpose.msra.mxu0 0.0
        %856 = vmatprep.subr.mxu0 0.0
        %857 = vmatpush1.xpose.msra.mxu0 0.0
        %858 = vmatprep.subr.mxu0 0.0
        %859 = vmatpush1.xpose.msra.mxu0 0.0
        %860 = vmatprep.subr.mxu0 0.0
        %861 = vmatpush1.xpose.msra.mxu0 0.0
        %862 = vmatprep.subr.mxu0 0.0
        %863 = vmatpush1.xpose.msra.mxu0 0.0
        %864 = vmatprep.subr.mxu0 0.0
        %865 = vmatpush1.xpose.msra.mxu0 0.0
        %866 = vmatprep.subr.mxu0 0.0
        %867 = vmatpush1.xpose.msra.mxu0 0.0
        %868 = vmatprep.subr.mxu0 0.0
        %869 = vmatpush1.xpose.msra.mxu0 0.0
        %870 = vmatprep.subr.mxu0 0.0
        %871 = vmatpush1.xpose.msra.mxu0 0.0
        %872 = vmatprep.subr.mxu0 0.0
        %873 = vmatpush1.xpose.msra.mxu0 0.0
        %874 = vmatprep.subr.mxu0 0.0
        %875 = vmatpush1.xpose.msra.mxu0 0.0
        %876 = vmatprep.subr.mxu0 0.0
        %877 = vmatpush1.xpose.msra.mxu0 0.0
        %878 = vmatprep.subr.mxu0 0.0
        %879 = vmatpush1.xpose.msra.mxu0 0.0
        %880 = vmatprep.subr.mxu0 0.0
        %881 = vmatpush1.xpose.msra.mxu0 0.0
        %882 = vmatprep.subr.mxu0 0.0
        %883 = vmatpush1.xpose.msra.mxu0 0.0
        %884 = vmatprep.subr.mxu0 0.0
        %885 = vmatpush1.xpose.msra.mxu0 0.0
        %886 = vmatprep.mubr.f32.mxu0 0.0
        %887 = vmatmul.mubr.f32.gmra.mrb[0].mxu0 %v818
        %v888 = vpop.f32.mrb[0].mxu0
        %v889 = vadd.f32 0.0, %v888
        %v890 = vpop.f32.mrb[0].mxu0
        %891 = vdwg.mxu0
        %v892 = vsel %vm560, -1e+09, %v889
        %v893 = vsel %vm649, %v892, -inf
        %894 = vmax.xlane.f32.xlu0 %v893
        %v895 = vpop.xlane.xlu0 %894
        %v896 = vsub.f32 %v892, %v895
        %v897 = vmul.f32 %v896, 1.442695
        %v898 = vpow.pop %v897
        %v899 = vsel %vm649, %v898, 0.0
        %900 = vadd.xlane.f32.xlu0 %v899
        %v901 = vpop.xlane.xlu0 %900
        %v902 = vrcp.pop %v901
        %v903 = vmul.f32 %v898, %v902
        %s904 = scalar_lea.vmem %s557, 8 [#allocation8]
        %905 = vst.msk [vmem:[%s904] sm:$0xff] %vm649, %v903
        %906 = vrot.lane.b32.xlu0 %v643, 56
        %v907 = vpop.permute.xlu0 %906
        %v910 = vsel %vm649, %v903, 0
        %912 = vmatprep.subr.mxu0 0.0
        %913 = vmatpush1.msra.mxu0 %v907
        %914 = vmatprep.subr.mxu0 0.0
        %915 = vmatpush1.msra.mxu0 0.0
        %916 = vmatprep.subr.mxu0 0.0
        %917 = vmatpush1.msra.mxu0 0.0
        %918 = vmatprep.subr.mxu0 0.0
        %919 = vmatpush1.msra.mxu0 0.0
        %920 = vmatprep.subr.mxu0 0.0
        %921 = vmatpush1.msra.mxu0 0.0
        %922 = vmatprep.subr.mxu0 0.0
        %923 = vmatpush1.msra.mxu0 0.0
        %924 = vmatprep.subr.mxu0 0.0
        %925 = vmatpush1.msra.mxu0 0.0
        %926 = vmatprep.subr.mxu0 0.0
        %927 = vmatpush1.msra.mxu0 0.0
        %928 = vmatprep.subr.mxu0 0.0
        %929 = vmatpush1.msra.mxu0 0.0
        %930 = vmatprep.subr.mxu0 0.0
        %931 = vmatpush1.msra.mxu0 0.0
        %932 = vmatprep.subr.mxu0 0.0
        %933 = vmatpush1.msra.mxu0 0.0
        %934 = vmatprep.subr.mxu0 0.0
        %935 = vmatpush1.msra.mxu0 0.0
        %936 = vmatprep.subr.mxu0 0.0
        %937 = vmatpush1.msra.mxu0 0.0
        %938 = vmatprep.subr.mxu0 0.0
        %939 = vmatpush1.msra.mxu0 0.0
        %940 = vmatprep.subr.mxu0 0.0
        %941 = vmatpush1.msra.mxu0 0.0
        %942 = vmatprep.subr.mxu0 0.0
        %943 = vmatpush1.msra.mxu0 0.0
        %944 = vmatprep.subr.mxu0 0.0
        %945 = vmatpush1.msra.mxu0 0.0
        %946 = vmatprep.subr.mxu0 0.0
        %947 = vmatpush1.msra.mxu0 0.0
        %948 = vmatprep.subr.mxu0 0.0
        %949 = vmatpush1.msra.mxu0 0.0
        %950 = vmatprep.subr.mxu0 0.0
        %951 = vmatpush1.msra.mxu0 0.0
        %952 = vmatprep.subr.mxu0 0.0
        %953 = vmatpush1.msra.mxu0 0.0
        %954 = vmatprep.subr.mxu0 0.0
        %955 = vmatpush1.msra.mxu0 0.0
        %956 = vmatprep.subr.mxu0 0.0
        %957 = vmatpush1.msra.mxu0 0.0
        %958 = vmatprep.subr.mxu0 0.0
        %959 = vmatpush1.msra.mxu0 0.0
        %960 = vmatprep.subr.mxu0 0.0
        %961 = vmatpush1.msra.mxu0 0.0
        %962 = vmatprep.subr.mxu0 0.0
        %963 = vmatpush1.msra.mxu0 0.0
        %964 = vmatprep.subr.mxu0 0.0
        %965 = vmatpush1.msra.mxu0 0.0
        %966 = vmatprep.subr.mxu0 0.0
        %967 = vmatpush1.msra.mxu0 0.0
        %968 = vmatprep.subr.mxu0 0.0
        %969 = vmatpush1.msra.mxu0 0.0
        %970 = vmatprep.subr.mxu0 0.0
        %971 = vmatpush1.msra.mxu0 0.0
        %972 = vmatprep.subr.mxu0 0.0
        %973 = vmatpush1.msra.mxu0 0.0
        %974 = vmatprep.subr.mxu0 0.0
        %975 = vmatpush1.msra.mxu0 0.0
        %976 = vmatprep.mubr.f32.mxu0 0.0
        %977 = vmatmul.mubr.f32.gmra.mrb[0].mxu0 %v910
        %v978 = vpop.f32.mrb[0].mxu0
        %v979 = vadd.f32 0.0, %v978
        %v980 = vpop.f32.mrb[0].mxu0
        %981 = vdwg.mxu0
        %v982 = vld [vmem:[%s4 + $0x8] sm:$0xff]
        %v984 = vsel %vm649, %v979, 0
        %986 = vmatprep.subr.mxu0 0.0
        %987 = vmatpush1.msra.mxu0 %v982
        %988 = vmatprep.subr.mxu0 0.0
        %989 = vmatpush1.msra.mxu0 0.0
        %990 = vmatprep.subr.mxu0 0.0
        %991 = vmatpush1.msra.mxu0 0.0
        %992 = vmatprep.subr.mxu0 0.0
        %993 = vmatpush1.msra.mxu0 0.0
        %994 = vmatprep.subr.mxu0 0.0
        %995 = vmatpush1.msra.mxu0 0.0
        %996 = vmatprep.subr.mxu0 0.0
        %997 = vmatpush1.msra.mxu0 0.0
        %998 = vmatprep.subr.mxu0 0.0
        %999 = vmatpush1.msra.mxu0 0.0
        %1000 = vmatprep.subr.mxu0 0.0
        %1001 = vmatpush1.msra.mxu0 0.0
        %1002 = vmatprep.subr.mxu0 0.0
        %1003 = vmatpush1.msra.mxu0 0.0
        %1004 = vmatprep.subr.mxu0 0.0
        %1005 = vmatpush1.msra.mxu0 0.0
        %1006 = vmatprep.subr.mxu0 0.0
        %1007 = vmatpush1.msra.mxu0 0.0
        %1008 = vmatprep.subr.mxu0 0.0
        %1009 = vmatpush1.msra.mxu0 0.0
        %1010 = vmatprep.subr.mxu0 0.0
        %1011 = vmatpush1.msra.mxu0 0.0
        %1012 = vmatprep.subr.mxu0 0.0
        %1013 = vmatpush1.msra.mxu0 0.0
        %1014 = vmatprep.subr.mxu0 0.0
        %1015 = vmatpush1.msra.mxu0 0.0
        %1016 = vmatprep.subr.mxu0 0.0
        %1017 = vmatpush1.msra.mxu0 0.0
        %1018 = vmatprep.subr.mxu0 0.0
        %1019 = vmatpush1.msra.mxu0 0.0
        %1020 = vmatprep.subr.mxu0 0.0
        %1021 = vmatpush1.msra.mxu0 0.0
        %1022 = vmatprep.subr.mxu0 0.0
        %1023 = vmatpush1.msra.mxu0 0.0
        %1024 = vmatprep.subr.mxu0 0.0
        %1025 = vmatpush1.msra.mxu0 0.0
        %1026 = vmatprep.subr.mxu0 0.0
        %1027 = vmatpush1.msra.mxu0 0.0
        %1028 = vmatprep.subr.mxu0 0.0
        %1029 = vmatpush1.msra.mxu0 0.0
        %1030 = vmatprep.subr.mxu0 0.0
        %1031 = vmatpush1.msra.mxu0 0.0
        %1032 = vmatprep.subr.mxu0 0.0
        %1033 = vmatpush1.msra.mxu0 0.0
        %1034 = vmatprep.subr.mxu0 0.0
        %1035 = vmatpush1.msra.mxu0 0.0
        %1036 = vmatprep.subr.mxu0 0.0
        %1037 = vmatpush1.msra.mxu0 0.0
        %1038 = vmatprep.subr.mxu0 0.0
        %1039 = vmatpush1.msra.mxu0 0.0
        %1040 = vmatprep.subr.mxu0 0.0
        %1041 = vmatpush1.msra.mxu0 0.0
        %1042 = vmatprep.subr.mxu0 0.0
        %1043 = vmatpush1.msra.mxu0 0.0
        %1044 = vmatprep.subr.mxu0 0.0
        %1045 = vmatpush1.msra.mxu0 0.0
        %1046 = vmatprep.subr.mxu0 0.0
        %1047 = vmatpush1.msra.mxu0 0.0
        %1048 = vmatprep.subr.mxu0 0.0
        %1049 = vmatpush1.msra.mxu0 0.0
        %1050 = vmatprep.mubr.f32.mxu0 0.0
        %1051 = vmatmul.mubr.f32.gmra.mrb[0].mxu0 %v984
        %v1052 = vpop.f32.mrb[0].mxu0
        %v1053 = vadd.f32 0.0, %v1052
        %v1054 = vpop.f32.mrb[0].mxu0
        %1055 = vdwg.mxu0
        %v1057 = vsel %vm649, %v810, 0
        %1059 = vmatprep.subr.mxu0 0.0
        %1060 = vmatpush1.msra.mxu0 %v813
        %1061 = vmatprep.subr.mxu0 0.0
        %1062 = vmatpush1.msra.mxu0 0.0
        %1063 = vmatprep.subr.mxu0 0.0
        %1064 = vmatpush1.msra.mxu0 0.0
        %1065 = vmatprep.subr.mxu0 0.0
        %1066 = vmatpush1.msra.mxu0 0.0
        %1067 = vmatprep.subr.mxu0 0.0
        %1068 = vmatpush1.msra.mxu0 0.0
        %1069 = vmatprep.subr.mxu0 0.0
        %1070 = vmatpush1.msra.mxu0 0.0
        %1071 = vmatprep.subr.mxu0 0.0
        %1072 = vmatpush1.msra.mxu0 0.0
        %1073 = vmatprep.subr.mxu0 0.0
        %1074 = vmatpush1.msra.mxu0 0.0
        %1075 = vmatprep.subr.mxu0 0.0
        %1076 = vmatpush1.msra.mxu0 0.0
        %1077 = vmatprep.subr.mxu0 0.0
        %1078 = vmatpush1.msra.mxu0 0.0
        %1079 = vmatprep.subr.mxu0 0.0
        %1080 = vmatpush1.msra.mxu0 0.0
        %1081 = vmatprep.subr.mxu0 0.0
        %1082 = vmatpush1.msra.mxu0 0.0
        %1083 = vmatprep.subr.mxu0 0.0
        %1084 = vmatpush1.msra.mxu0 0.0
        %1085 = vmatprep.subr.mxu0 0.0
        %1086 = vmatpush1.msra.mxu0 0.0
        %1087 = vmatprep.subr.mxu0 0.0
        %1088 = vmatpush1.msra.mxu0 0.0
        %1089 = vmatprep.subr.mxu0 0.0
        %1090 = vmatpush1.msra.mxu0 0.0
        %1091 = vmatprep.subr.mxu0 0.0
        %1092 = vmatpush1.msra.mxu0 0.0
        %1093 = vmatprep.subr.mxu0 0.0
        %1094 = vmatpush1.msra.mxu0 0.0
        %1095 = vmatprep.subr.mxu0 0.0
        %1096 = vmatpush1.msra.mxu0 0.0
        %1097 = vmatprep.subr.mxu0 0.0
        %1098 = vmatpush1.msra.mxu0 0.0
        %1099 = vmatprep.subr.mxu0 0.0
        %1100 = vmatpush1.msra.mxu0 0.0
        %1101 = vmatprep.subr.mxu0 0.0
        %1102 = vmatpush1.msra.mxu0 0.0
        %1103 = vmatprep.subr.mxu0 0.0
        %1104 = vmatpush1.msra.mxu0 0.0
        %1105 = vmatprep.subr.mxu0 0.0
        %1106 = vmatpush1.msra.mxu0 0.0
        %1107 = vmatprep.subr.mxu0 0.0
        %1108 = vmatpush1.msra.mxu0 0.0
        %1109 = vmatprep.subr.mxu0 0.0
        %1110 = vmatpush1.msra.mxu0 0.0
        %1111 = vmatprep.subr.mxu0 0.0
        %1112 = vmatpush1.msra.mxu0 0.0
        %1113 = vmatprep.subr.mxu0 0.0
        %1114 = vmatpush1.msra.mxu0 0.0
        %1115 = vmatprep.subr.mxu0 0.0
        %1116 = vmatpush1.msra.mxu0 0.0
        %1117 = vmatprep.subr.mxu0 0.0
        %1118 = vmatpush1.msra.mxu0 0.0
        %1119 = vmatprep.subr.mxu0 0.0
        %1120 = vmatpush1.msra.mxu0 0.0
        %1121 = vmatprep.subr.mxu0 0.0
        %1122 = vmatpush1.msra.mxu0 0.0
        %1123 = vmatprep.mubr.f32.mxu0 0.0
        %1124 = vmatmul.mubr.f32.gmra.mrb[0].mxu0 %v1057
        %v1125 = vpop.f32.mrb[0].mxu0
        %v1126 = vadd.f32 %v1053, %v1125
        %v1127 = vpop.f32.mrb[0].mxu0
        %1128 = vdwg.mxu0
        %1129 = vrot.lane.b32.xlu0 %v643, 112
        %v1130 = vpop.permute.xlu0 %1129
        %1131 = vrot.lane.b32.xlu0 %v643, 80
        %v1132 = vpop.permute.xlu0 %1131
        %v1133 = vsel %vm649, %v1130, 0
        %v1135 = vsel %vm649, %v1132, 0
        %1137 = vmatprep.subr.mxu0 0.0
        %1138 = vmatpush1.xpose.msra.mxu0 %v1135
        %1139 = vmatprep.subr.mxu0 0.0
        %1140 = vmatpush1.xpose.msra.mxu0 0.0
        %1141 = vmatprep.subr.mxu0 0.0
        %1142 = vmatpush1.xpose.msra.mxu0 0.0
        %1143 = vmatprep.subr.mxu0 0.0
        %1144 = vmatpush1.xpose.msra.mxu0 0.0
        %1145 = vmatprep.subr.mxu0 0.0
        %1146 = vmatpush1.xpose.msra.mxu0 0.0
        %1147 = vmatprep.subr.mxu0 0.0
        %1148 = vmatpush1.xpose.msra.mxu0 0.0
        %1149 = vmatprep.subr.mxu0 0.0
        %1150 = vmatpush1.xpose.msra.mxu0 0.0
        %1151 = vmatprep.subr.mxu0 0.0
        %1152 = vmatpush1.xpose.msra.mxu0 0.0
        %1153 = vmatprep.subr.mxu0 0.0
        %1154 = vmatpush1.xpose.msra.mxu0 0.0
        %1155 = vmatprep.subr.mxu0 0.0
        %1156 = vmatpush1.xpose.msra.mxu0 0.0
        %1157 = vmatprep.subr.mxu0 0.0
        %1158 = vmatpush1.xpose.msra.mxu0 0.0
        %1159 = vmatprep.subr.mxu0 0.0
        %1160 = vmatpush1.xpose.msra.mxu0 0.0
        %1161 = vmatprep.subr.mxu0 0.0
        %1162 = vmatpush1.xpose.msra.mxu0 0.0
        %1163 = vmatprep.subr.mxu0 0.0
        %1164 = vmatpush1.xpose.msra.mxu0 0.0
        %1165 = vmatprep.subr.mxu0 0.0
        %1166 = vmatpush1.xpose.msra.mxu0 0.0
        %1167 = vmatprep.subr.mxu0 0.0
        %1168 = vmatpush1.xpose.msra.mxu0 0.0
        %1169 = vmatprep.subr.mxu0 0.0
        %1170 = vmatpush1.xpose.msra.mxu0 0.0
        %1171 = vmatprep.subr.mxu0 0.0
        %1172 = vmatpush1.xpose.msra.mxu0 0.0
        %1173 = vmatprep.subr.mxu0 0.0
        %1174 = vmatpush1.xpose.msra.mxu0 0.0
        %1175 = vmatprep.subr.mxu0 0.0
        %1176 = vmatpush1.xpose.msra.mxu0 0.0
        %1177 = vmatprep.subr.mxu0 0.0
        %1178 = vmatpush1.xpose.msra.mxu0 0.0
        %1179 = vmatprep.subr.mxu0 0.0
        %1180 = vmatpush1.xpose.msra.mxu0 0.0
        %1181 = vmatprep.subr.mxu0 0.0
        %1182 = vmatpush1.xpose.msra.mxu0 0.0
        %1183 = vmatprep.subr.mxu0 0.0
        %1184 = vmatpush1.xpose.msra.mxu0 0.0
        %1185 = vmatprep.subr.mxu0 0.0
        %1186 = vmatpush1.xpose.msra.mxu0 0.0
        %1187 = vmatprep.subr.mxu0 0.0
        %1188 = vmatpush1.xpose.msra.mxu0 0.0
        %1189 = vmatprep.subr.mxu0 0.0
        %1190 = vmatpush1.xpose.msra.mxu0 0.0
        %1191 = vmatprep.subr.mxu0 0.0
        %1192 = vmatpush1.xpose.msra.mxu0 0.0
        %1193 = vmatprep.subr.mxu0 0.0
        %1194 = vmatpush1.xpose.msra.mxu0 0.0
        %1195 = vmatprep.subr.mxu0 0.0
        %1196 = vmatpush1.xpose.msra.mxu0 0.0
        %1197 = vmatprep.subr.mxu0 0.0
        %1198 = vmatpush1.xpose.msra.mxu0 0.0
        %1199 = vmatprep.subr.mxu0 0.0
        %1200 = vmatpush1.xpose.msra.mxu0 0.0
        %1201 = vmatprep.mubr.f32.mxu0 0.0
        %1202 = vmatmul.mubr.f32.gmra.mrb[0].mxu0 %v1133
        %v1203 = vpop.f32.mrb[0].mxu0
        %v1204 = vadd.f32 0.0, %v1203
        %v1205 = vpop.f32.mrb[0].mxu0
        %1206 = vdwg.mxu0
        %v1207 = vsel %vm560, -1e+09, %v1204
        %v1208 = vsel %vm649, %v1207, -inf
        %1209 = vmax.xlane.f32.xlu0 %v1208
        %v1210 = vpop.xlane.xlu0 %1209
        %v1211 = vsub.f32 %v1207, %v1210
        %v1212 = vmul.f32 %v1211, 1.442695
        %v1213 = vpow.pop %v1212
        %v1214 = vsel %vm649, %v1213, 0.0
        %1215 = vadd.xlane.f32.xlu0 %v1214
        %v1216 = vpop.xlane.xlu0 %1215
        %v1217 = vrcp.pop %v1216
        %v1218 = vmul.f32 %v1213, %v1217
        %s1219 = scalar_lea.vmem %s557, 16 [#allocation8]
        %1220 = vst.msk [vmem:[%s1219] sm:$0xff] %vm649, %v1218
        %1221 = vrot.lane.b32.xlu0 %v643, 48
        %v1222 = vpop.permute.xlu0 %1221
        %v1225 = vsel %vm649, %v1218, 0
        %1227 = vmatprep.subr.mxu0 0.0
        %1228 = vmatpush1.msra.mxu0 %v1222
        %1229 = vmatprep.subr.mxu0 0.0
        %1230 = vmatpush1.msra.mxu0 0.0
        %1231 = vmatprep.subr.mxu0 0.0
        %1232 = vmatpush1.msra.mxu0 0.0
        %1233 = vmatprep.subr.mxu0 0.0
        %1234 = vmatpush1.msra.mxu0 0.0
        %1235 = vmatprep.subr.mxu0 0.0
        %1236 = vmatpush1.msra.mxu0 0.0
        %1237 = vmatprep.subr.mxu0 0.0
        %1238 = vmatpush1.msra.mxu0 0.0
        %1239 = vmatprep.subr.mxu0 0.0
        %1240 = vmatpush1.msra.mxu0 0.0
        %1241 = vmatprep.subr.mxu0 0.0
        %1242 = vmatpush1.msra.mxu0 0.0
        %1243 = vmatprep.subr.mxu0 0.0
        %1244 = vmatpush1.msra.mxu0 0.0
        %1245 = vmatprep.subr.mxu0 0.0
        %1246 = vmatpush1.msra.mxu0 0.0
        %1247 = vmatprep.subr.mxu0 0.0
        %1248 = vmatpush1.msra.mxu0 0.0
        %1249 = vmatprep.subr.mxu0 0.0
        %1250 = vmatpush1.msra.mxu0 0.0
        %1251 = vmatprep.subr.mxu0 0.0
        %1252 = vmatpush1.msra.mxu0 0.0
        %1253 = vmatprep.subr.mxu0 0.0
        %1254 = vmatpush1.msra.mxu0 0.0
        %1255 = vmatprep.subr.mxu0 0.0
        %1256 = vmatpush1.msra.mxu0 0.0
        %1257 = vmatprep.subr.mxu0 0.0
        %1258 = vmatpush1.msra.mxu0 0.0
        %1259 = vmatprep.subr.mxu0 0.0
        %1260 = vmatpush1.msra.mxu0 0.0
        %1261 = vmatprep.subr.mxu0 0.0
        %1262 = vmatpush1.msra.mxu0 0.0
        %1263 = vmatprep.subr.mxu0 0.0
        %1264 = vmatpush1.msra.mxu0 0.0
        %1265 = vmatprep.subr.mxu0 0.0
        %1266 = vmatpush1.msra.mxu0 0.0
        %1267 = vmatprep.subr.mxu0 0.0
        %1268 = vmatpush1.msra.mxu0 0.0
        %1269 = vmatprep.subr.mxu0 0.0
        %1270 = vmatpush1.msra.mxu0 0.0
        %1271 = vmatprep.subr.mxu0 0.0
        %1272 = vmatpush1.msra.mxu0 0.0
        %1273 = vmatprep.subr.mxu0 0.0
        %1274 = vmatpush1.msra.mxu0 0.0
        %1275 = vmatprep.subr.mxu0 0.0
        %1276 = vmatpush1.msra.mxu0 0.0
        %1277 = vmatprep.subr.mxu0 0.0
        %1278 = vmatpush1.msra.mxu0 0.0
        %1279 = vmatprep.subr.mxu0 0.0
        %1280 = vmatpush1.msra.mxu0 0.0
        %1281 = vmatprep.subr.mxu0 0.0
        %1282 = vmatpush1.msra.mxu0 0.0
        %1283 = vmatprep.subr.mxu0 0.0
        %1284 = vmatpush1.msra.mxu0 0.0
        %1285 = vmatprep.subr.mxu0 0.0
        %1286 = vmatpush1.msra.mxu0 0.0
        %1287 = vmatprep.subr.mxu0 0.0
        %1288 = vmatpush1.msra.mxu0 0.0
        %1289 = vmatprep.subr.mxu0 0.0
        %1290 = vmatpush1.msra.mxu0 0.0
        %1291 = vmatprep.mubr.f32.mxu0 0.0
        %1292 = vmatmul.mubr.f32.gmra.mrb[0].mxu0 %v1225
        %v1293 = vpop.f32.mrb[0].mxu0
        %v1294 = vadd.f32 0.0, %v1293
        %v1295 = vpop.f32.mrb[0].mxu0
        %1296 = vdwg.mxu0
        %v1297 = vld [vmem:[%s4 + $0x10] sm:$0xff]
        %v1299 = vsel %vm649, %v1294, 0
        %1301 = vmatprep.subr.mxu0 0.0
        %1302 = vmatpush1.msra.mxu0 %v1297
        %1303 = vmatprep.subr.mxu0 0.0
        %1304 = vmatpush1.msra.mxu0 0.0
        %1305 = vmatprep.subr.mxu0 0.0
        %1306 = vmatpush1.msra.mxu0 0.0
        %1307 = vmatprep.subr.mxu0 0.0
        %1308 = vmatpush1.msra.mxu0 0.0
        %1309 = vmatprep.subr.mxu0 0.0
        %1310 = vmatpush1.msra.mxu0 0.0
        %1311 = vmatprep.subr.mxu0 0.0
        %1312 = vmatpush1.msra.mxu0 0.0
        %1313 = vmatprep.subr.mxu0 0.0
        %1314 = vmatpush1.msra.mxu0 0.0
        %1315 = vmatprep.subr.mxu0 0.0
        %1316 = vmatpush1.msra.mxu0 0.0
        %1317 = vmatprep.subr.mxu0 0.0
        %1318 = vmatpush1.msra.mxu0 0.0
        %1319 = vmatprep.subr.mxu0 0.0
        %1320 = vmatpush1.msra.mxu0 0.0
        %1321 = vmatprep.subr.mxu0 0.0
        %1322 = vmatpush1.msra.mxu0 0.0
        %1323 = vmatprep.subr.mxu0 0.0
        %1324 = vmatpush1.msra.mxu0 0.0
        %1325 = vmatprep.subr.mxu0 0.0
        %1326 = vmatpush1.msra.mxu0 0.0
        %1327 = vmatprep.subr.mxu0 0.0
        %1328 = vmatpush1.msra.mxu0 0.0
        %1329 = vmatprep.subr.mxu0 0.0
        %1330 = vmatpush1.msra.mxu0 0.0
        %1331 = vmatprep.subr.mxu0 0.0
        %1332 = vmatpush1.msra.mxu0 0.0
        %1333 = vmatprep.subr.mxu0 0.0
        %1334 = vmatpush1.msra.mxu0 0.0
        %1335 = vmatprep.subr.mxu0 0.0
        %1336 = vmatpush1.msra.mxu0 0.0
        %1337 = vmatprep.subr.mxu0 0.0
        %1338 = vmatpush1.msra.mxu0 0.0
        %1339 = vmatprep.subr.mxu0 0.0
        %1340 = vmatpush1.msra.mxu0 0.0
        %1341 = vmatprep.subr.mxu0 0.0
        %1342 = vmatpush1.msra.mxu0 0.0
        %1343 = vmatprep.subr.mxu0 0.0
        %1344 = vmatpush1.msra.mxu0 0.0
        %1345 = vmatprep.subr.mxu0 0.0
        %1346 = vmatpush1.msra.mxu0 0.0
        %1347 = vmatprep.subr.mxu0 0.0
        %1348 = vmatpush1.msra.mxu0 0.0
        %1349 = vmatprep.subr.mxu0 0.0
        %1350 = vmatpush1.msra.mxu0 0.0
        %1351 = vmatprep.subr.mxu0 0.0
        %1352 = vmatpush1.msra.mxu0 0.0
        %1353 = vmatprep.subr.mxu0 0.0
        %1354 = vmatpush1.msra.mxu0 0.0
        %1355 = vmatprep.subr.mxu0 0.0
        %1356 = vmatpush1.msra.mxu0 0.0
        %1357 = vmatprep.subr.mxu0 0.0
        %1358 = vmatpush1.msra.mxu0 0.0
        %1359 = vmatprep.subr.mxu0 0.0
        %1360 = vmatpush1.msra.mxu0 0.0
        %1361 = vmatprep.subr.mxu0 0.0
        %1362 = vmatpush1.msra.mxu0 0.0
        %1363 = vmatprep.subr.mxu0 0.0
        %1364 = vmatpush1.msra.mxu0 0.0
        %1365 = vmatprep.mubr.f32.mxu0 0.0
        %1366 = vmatmul.mubr.f32.gmra.mrb[0].mxu0 %v1299
        %v1367 = vpop.f32.mrb[0].mxu0
        %v1368 = vadd.f32 0.0, %v1367
        %v1369 = vpop.f32.mrb[0].mxu0
        %1370 = vdwg.mxu0
        %v1371 = vadd.f32 %v1126, %v1368
        %1372 = vrot.lane.b32.xlu0 %v643, 104
        %v1373 = vpop.permute.xlu0 %1372
        %1374 = vrot.lane.b32.xlu0 %v643, 72
        %v1375 = vpop.permute.xlu0 %1374
        %v1376 = vsel %vm649, %v1373, 0
        %v1378 = vsel %vm649, %v1375, 0
        %1380 = vmatprep.subr.mxu0 0.0
        %1381 = vmatpush1.xpose.msra.mxu0 %v1378
        %1382 = vmatprep.subr.mxu0 0.0
        %1383 = vmatpush1.xpose.msra.mxu0 0.0
        %1384 = vmatprep.subr.mxu0 0.0
        %1385 = vmatpush1.xpose.msra.mxu0 0.0
        %1386 = vmatprep.subr.mxu0 0.0
        %1387 = vmatpush1.xpose.msra.mxu0 0.0
        %1388 = vmatprep.subr.mxu0 0.0
        %1389 = vmatpush1.xpose.msra.mxu0 0.0
        %1390 = vmatprep.subr.mxu0 0.0
        %1391 = vmatpush1.xpose.msra.mxu0 0.0
        %1392 = vmatprep.subr.mxu0 0.0
        %1393 = vmatpush1.xpose.msra.mxu0 0.0
        %1394 = vmatprep.subr.mxu0 0.0
        %1395 = vmatpush1.xpose.msra.mxu0 0.0
        %1396 = vmatprep.subr.mxu0 0.0
        %1397 = vmatpush1.xpose.msra.mxu0 0.0
        %1398 = vmatprep.subr.mxu0 0.0
        %1399 = vmatpush1.xpose.msra.mxu0 0.0
        %1400 = vmatprep.subr.mxu0 0.0
        %1401 = vmatpush1.xpose.msra.mxu0 0.0
        %1402 = vmatprep.subr.mxu0 0.0
        %1403 = vmatpush1.xpose.msra.mxu0 0.0
        %1404 = vmatprep.subr.mxu0 0.0
        %1405 = vmatpush1.xpose.msra.mxu0 0.0
        %1406 = vmatprep.subr.mxu0 0.0
        %1407 = vmatpush1.xpose.msra.mxu0 0.0
        %1408 = vmatprep.subr.mxu0 0.0
        %1409 = vmatpush1.xpose.msra.mxu0 0.0
        %1410 = vmatprep.subr.mxu0 0.0
        %1411 = vmatpush1.xpose.msra.mxu0 0.0
        %1412 = vmatprep.subr.mxu0 0.0
        %1413 = vmatpush1.xpose.msra.mxu0 0.0
        %1414 = vmatprep.subr.mxu0 0.0
        %1415 = vmatpush1.xpose.msra.mxu0 0.0
        %1416 = vmatprep.subr.mxu0 0.0
        %1417 = vmatpush1.xpose.msra.mxu0 0.0
        %1418 = vmatprep.subr.mxu0 0.0
        %1419 = vmatpush1.xpose.msra.mxu0 0.0
        %1420 = vmatprep.subr.mxu0 0.0
        %1421 = vmatpush1.xpose.msra.mxu0 0.0
        %1422 = vmatprep.subr.mxu0 0.0
        %1423 = vmatpush1.xpose.msra.mxu0 0.0
        %1424 = vmatprep.subr.mxu0 0.0
        %1425 = vmatpush1.xpose.msra.mxu0 0.0
        %1426 = vmatprep.subr.mxu0 0.0
        %1427 = vmatpush1.xpose.msra.mxu0 0.0
        %1428 = vmatprep.subr.mxu0 0.0
        %1429 = vmatpush1.xpose.msra.mxu0 0.0
        %1430 = vmatprep.subr.mxu0 0.0
        %1431 = vmatpush1.xpose.msra.mxu0 0.0
        %1432 = vmatprep.subr.mxu0 0.0
        %1433 = vmatpush1.xpose.msra.mxu0 0.0
        %1434 = vmatprep.subr.mxu0 0.0
        %1435 = vmatpush1.xpose.msra.mxu0 0.0
        %1436 = vmatprep.subr.mxu0 0.0
        %1437 = vmatpush1.xpose.msra.mxu0 0.0
        %1438 = vmatprep.subr.mxu0 0.0
        %1439 = vmatpush1.xpose.msra.mxu0 0.0
        %1440 = vmatprep.subr.mxu0 0.0
        %1441 = vmatpush1.xpose.msra.mxu0 0.0
        %1442 = vmatprep.subr.mxu0 0.0
        %1443 = vmatpush1.xpose.msra.mxu0 0.0
        %1444 = vmatprep.mubr.f32.mxu0 0.0
        %1445 = vmatmul.mubr.f32.gmra.mrb[0].mxu0 %v1376
        %v1446 = vpop.f32.mrb[0].mxu0
        %v1447 = vadd.f32 0.0, %v1446
        %v1448 = vpop.f32.mrb[0].mxu0
        %1449 = vdwg.mxu0
        %v1450 = vsel %vm560, -1e+09, %v1447
        %v1451 = vsel %vm649, %v1450, -inf
        %1452 = vmax.xlane.f32.xlu0 %v1451
        %v1453 = vpop.xlane.xlu0 %1452
        %v1454 = vsub.f32 %v1450, %v1453
        %v1455 = vmul.f32 %v1454, 1.442695
        %v1456 = vpow.pop %v1455
        %v1457 = vsel %vm649, %v1456, 0.0
        %1458 = vadd.xlane.f32.xlu0 %v1457
        %v1459 = vpop.xlane.xlu0 %1458
        %v1460 = vrcp.pop %v1459
        %v1461 = vmul.f32 %v1456, %v1460
        %s1462 = scalar_lea.vmem %s557, 24 [#allocation8]
        %1463 = vst.msk [vmem:[%s1462] sm:$0xff] %vm649, %v1461
        %1464 = vrot.lane.b32.xlu0 %v643, 40
        %v1465 = vpop.permute.xlu0 %1464
        %v1468 = vsel %vm649, %v1461, 0
        %1470 = vmatprep.subr.mxu0 0.0
        %1471 = vmatpush1.msra.mxu0 %v1465
        %1472 = vmatprep.subr.mxu0 0.0
        %1473 = vmatpush1.msra.mxu0 0.0
        %1474 = vmatprep.subr.mxu0 0.0
        %1475 = vmatpush1.msra.mxu0 0.0
        %1476 = vmatprep.subr.mxu0 0.0
        %1477 = vmatpush1.msra.mxu0 0.0
        %1478 = vmatprep.subr.mxu0 0.0
        %1479 = vmatpush1.msra.mxu0 0.0
        %1480 = vmatprep.subr.mxu0 0.0
        %1481 = vmatpush1.msra.mxu0 0.0
        %1482 = vmatprep.subr.mxu0 0.0
        %1483 = vmatpush1.msra.mxu0 0.0
        %1484 = vmatprep.subr.mxu0 0.0
        %1485 = vmatpush1.msra.mxu0 0.0
        %1486 = vmatprep.subr.mxu0 0.0
        %1487 = vmatpush1.msra.mxu0 0.0
        %1488 = vmatprep.subr.mxu0 0.0
        %1489 = vmatpush1.msra.mxu0 0.0
        %1490 = vmatprep.subr.mxu0 0.0
        %1491 = vmatpush1.msra.mxu0 0.0
        %1492 = vmatprep.subr.mxu0 0.0
        %1493 = vmatpush1.msra.mxu0 0.0
        %1494 = vmatprep.subr.mxu0 0.0
        %1495 = vmatpush1.msra.mxu0 0.0
        %1496 = vmatprep.subr.mxu0 0.0
        %1497 = vmatpush1.msra.mxu0 0.0
        %1498 = vmatprep.subr.mxu0 0.0
        %1499 = vmatpush1.msra.mxu0 0.0
        %1500 = vmatprep.subr.mxu0 0.0
        %1501 = vmatpush1.msra.mxu0 0.0
        %1502 = vmatprep.subr.mxu0 0.0
        %1503 = vmatpush1.msra.mxu0 0.0
        %1504 = vmatprep.subr.mxu0 0.0
        %1505 = vmatpush1.msra.mxu0 0.0
        %1506 = vmatprep.subr.mxu0 0.0
        %1507 = vmatpush1.msra.mxu0 0.0
        %1508 = vmatprep.subr.mxu0 0.0
        %1509 = vmatpush1.msra.mxu0 0.0
        %1510 = vmatprep.subr.mxu0 0.0
        %1511 = vmatpush1.msra.mxu0 0.0
        %1512 = vmatprep.subr.mxu0 0.0
        %1513 = vmatpush1.msra.mxu0 0.0
        %1514 = vmatprep.subr.mxu0 0.0
        %1515 = vmatpush1.msra.mxu0 0.0
        %1516 = vmatprep.subr.mxu0 0.0
        %1517 = vmatpush1.msra.mxu0 0.0
        %1518 = vmatprep.subr.mxu0 0.0
        %1519 = vmatpush1.msra.mxu0 0.0
        %1520 = vmatprep.subr.mxu0 0.0
        %1521 = vmatpush1.msra.mxu0 0.0
        %1522 = vmatprep.subr.mxu0 0.0
        %1523 = vmatpush1.msra.mxu0 0.0
        %1524 = vmatprep.subr.mxu0 0.0
        %1525 = vmatpush1.msra.mxu0 0.0
        %1526 = vmatprep.subr.mxu0 0.0
        %1527 = vmatpush1.msra.mxu0 0.0
        %1528 = vmatprep.subr.mxu0 0.0
        %1529 = vmatpush1.msra.mxu0 0.0
        %1530 = vmatprep.subr.mxu0 0.0
        %1531 = vmatpush1.msra.mxu0 0.0
        %1532 = vmatprep.subr.mxu0 0.0
        %1533 = vmatpush1.msra.mxu0 0.0
        %1534 = vmatprep.mubr.f32.mxu0 0.0
        %1535 = vmatmul.mubr.f32.gmra.mrb[0].mxu0 %v1468
        %v1536 = vpop.f32.mrb[0].mxu0
        %v1537 = vadd.f32 0.0, %v1536
        %v1538 = vpop.f32.mrb[0].mxu0
        %1539 = vdwg.mxu0
        %v1540 = vld [vmem:[%s4 + $0x18] sm:$0xff]
        %v1542 = vsel %vm649, %v1537, 0
        %1544 = vmatprep.subr.mxu0 0.0
        %1545 = vmatpush1.msra.mxu0 %v1540
        %1546 = vmatprep.subr.mxu0 0.0
        %1547 = vmatpush1.msra.mxu0 0.0
        %1548 = vmatprep.subr.mxu0 0.0
        %1549 = vmatpush1.msra.mxu0 0.0
        %1550 = vmatprep.subr.mxu0 0.0
        %1551 = vmatpush1.msra.mxu0 0.0
        %1552 = vmatprep.subr.mxu0 0.0
        %1553 = vmatpush1.msra.mxu0 0.0
        %1554 = vmatprep.subr.mxu0 0.0
        %1555 = vmatpush1.msra.mxu0 0.0
        %1556 = vmatprep.subr.mxu0 0.0
        %1557 = vmatpush1.msra.mxu0 0.0
        %1558 = vmatprep.subr.mxu0 0.0
        %1559 = vmatpush1.msra.mxu0 0.0
        %1560 = vmatprep.subr.mxu0 0.0
        %1561 = vmatpush1.msra.mxu0 0.0
        %1562 = vmatprep.subr.mxu0 0.0
        %1563 = vmatpush1.msra.mxu0 0.0
        %1564 = vmatprep.subr.mxu0 0.0
        %1565 = vmatpush1.msra.mxu0 0.0
        %1566 = vmatprep.subr.mxu0 0.0
        %1567 = vmatpush1.msra.mxu0 0.0
        %1568 = vmatprep.subr.mxu0 0.0
        %1569 = vmatpush1.msra.mxu0 0.0
        %1570 = vmatprep.subr.mxu0 0.0
        %1571 = vmatpush1.msra.mxu0 0.0
        %1572 = vmatprep.subr.mxu0 0.0
        %1573 = vmatpush1.msra.mxu0 0.0
        %1574 = vmatprep.subr.mxu0 0.0
        %1575 = vmatpush1.msra.mxu0 0.0
        %1576 = vmatprep.subr.mxu0 0.0
        %1577 = vmatpush1.msra.mxu0 0.0
        %1578 = vmatprep.subr.mxu0 0.0
        %1579 = vmatpush1.msra.mxu0 0.0
        %1580 = vmatprep.subr.mxu0 0.0
        %1581 = vmatpush1.msra.mxu0 0.0
        %1582 = vmatprep.subr.mxu0 0.0
        %1583 = vmatpush1.msra.mxu0 0.0
        %1584 = vmatprep.subr.mxu0 0.0
        %1585 = vmatpush1.msra.mxu0 0.0
        %1586 = vmatprep.subr.mxu0 0.0
        %1587 = vmatpush1.msra.mxu0 0.0
        %1588 = vmatprep.subr.mxu0 0.0
        %1589 = vmatpush1.msra.mxu0 0.0
        %1590 = vmatprep.subr.mxu0 0.0
        %1591 = vmatpush1.msra.mxu0 0.0
        %1592 = vmatprep.subr.mxu0 0.0
        %1593 = vmatpush1.msra.mxu0 0.0
        %1594 = vmatprep.subr.mxu0 0.0
        %1595 = vmatpush1.msra.mxu0 0.0
        %1596 = vmatprep.subr.mxu0 0.0
        %1597 = vmatpush1.msra.mxu0 0.0
        %1598 = vmatprep.subr.mxu0 0.0
        %1599 = vmatpush1.msra.mxu0 0.0
        %1600 = vmatprep.subr.mxu0 0.0
        %1601 = vmatpush1.msra.mxu0 0.0
        %1602 = vmatprep.subr.mxu0 0.0
        %1603 = vmatpush1.msra.mxu0 0.0
        %1604 = vmatprep.subr.mxu0 0.0
        %1605 = vmatpush1.msra.mxu0 0.0
        %1606 = vmatprep.subr.mxu0 0.0
        %1607 = vmatpush1.msra.mxu0 0.0
        %1608 = vmatprep.mubr.f32.mxu0 0.0
        %1609 = vmatmul.mubr.f32.gmra.mrb[0].mxu0 %v1542
        %v1610 = vpop.f32.mrb[0].mxu0
        %v1611 = vadd.f32 0.0, %v1610
        %v1612 = vpop.f32.mrb[0].mxu0
        %1613 = vdwg.mxu0
        %v1614 = vadd.f32 %v1371, %v1611
        %v1615 = vld [vmem:[%s5] sm:$0x1]
        %v1617 = vlaneseq
        %v1618 = vshrl.u32 %v1617, 7
        %v1619 = vsub.s32 0, %v1618
        %v1620 = vrot.slane %v1615, %v1619
        %v1622 = vadd.f32 %v1614, %v1620
        %v1623 = vadd.f32 %v1622, %v558
        %v1624 = vsel %vm572, %v1623, 0.0
        %1625 = vadd.xlane.f32.xlu0 %v1624
        %v1626 = vpop.xlane.xlu0 %1625
        %v1627 = vrcp.pop 32.0
        %v1628 = vmul.f32 %v1626, %v1627
        %v1629 = vsub.f32 %v1623, %v1628
        %v1630 = vmul.f32 %v1629, %v1629
        %v1631 = vsel %vm572, %v1630, 0.0
        %1632 = vadd.xlane.f32.xlu0 %v1631
        %v1633 = vpop.xlane.xlu0 %1632
        %v1634 = vmul.f32 %v1633, %v1627
        %v1635 = vadd.f32 %v1634, 1e-05
        %v1636 = vrsqrt.pop %v1635
        %v1637 = vmul.f32 %v1629, %v1636
        %v1638 = vld [vmem:[%s6] sm:$0x1]
        %v1640 = vlaneseq
        %v1641 = vshrl.u32 %v1640, 7
        %v1642 = vsub.s32 0, %v1641
        %v1643 = vrot.slane %v1638, %v1642
        %v1645 = vmul.f32 %v1637, %v1643
        %v1646 = vld [vmem:[%s7] sm:$0x1]
        %v1648 = vlaneseq
        %v1649 = vshrl.u32 %v1648, 7
        %v1650 = vsub.s32 0, %v1649
        %v1651 = vrot.slane %v1646, %v1650
        %v1653 = vadd.f32 %v1645, %v1651
        %v1654 = vld [vmem:[%s8] sm:$0xff]
        %v1655 = vld [vmem:[%s8 + $0x8] sm:$0xff]
        %v1656 = vld [vmem:[%s8 + $0x10] sm:$0xff]
        %v1657 = vld [vmem:[%s8 + $0x18] sm:$0xff]
        %v1658 = vld [vmem:[%s9] sm:$0x1]
        %v1660 = vlaneseq
        %v1661 = vshrl.u32 %v1660, 7
        %v1662 = vsub.s32 0, %v1661
        %v1663 = vrot.slane %v1658, %v1662
        %v1666 = vsel %vm572, %v1653, 0
        %1668 = vmatprep.subr.mxu0 0.0
        %1669 = vmatpush1.msra.mxu0 %v1654
        %1670 = vmatprep.subr.mxu0 0.0
        %1671 = vmatpush1.msra.mxu0 %v1655
        %1672 = vmatprep.subr.mxu0 0.0
        %1673 = vmatpush1.msra.mxu0 %v1656
        %1674 = vmatprep.subr.mxu0 0.0
        %1675 = vmatpush1.msra.mxu0 %v1657
        %1676 = vmatprep.subr.mxu0 0.0
        %1677 = vmatpush1.msra.mxu0 0.0
        %1678 = vmatprep.subr.mxu0 0.0
        %1679 = vmatpush1.msra.mxu0 0.0
        %1680 = vmatprep.subr.mxu0 0.0
        %1681 = vmatpush1.msra.mxu0 0.0
        %1682 = vmatprep.subr.mxu0 0.0
        %1683 = vmatpush1.msra.mxu0 0.0
        %1684 = vmatprep.subr.mxu0 0.0
        %1685 = vmatpush1.msra.mxu0 0.0
        %1686 = vmatprep.subr.mxu0 0.0
        %1687 = vmatpush1.msra.mxu0 0.0
        %1688 = vmatprep.subr.mxu0 0.0
        %1689 = vmatpush1.msra.mxu0 0.0
        %1690 = vmatprep.subr.mxu0 0.0
        %1691 = vmatpush1.msra.mxu0 0.0
        %1692 = vmatprep.subr.mxu0 0.0
        %1693 = vmatpush1.msra.mxu0 0.0
        %1694 = vmatprep.subr.mxu0 0.0
        %1695 = vmatpush1.msra.mxu0 0.0
        %1696 = vmatprep.subr.mxu0 0.0
        %1697 = vmatpush1.msra.mxu0 0.0
        %1698 = vmatprep.subr.mxu0 0.0
        %1699 = vmatpush1.msra.mxu0 0.0
        %1700 = vmatprep.subr.mxu0 0.0
        %1701 = vmatpush1.msra.mxu0 0.0
        %1702 = vmatprep.subr.mxu0 0.0
        %1703 = vmatpush1.msra.mxu0 0.0
        %1704 = vmatprep.subr.mxu0 0.0
        %1705 = vmatpush1.msra.mxu0 0.0
        %1706 = vmatprep.subr.mxu0 0.0
        %1707 = vmatpush1.msra.mxu0 0.0
        %1708 = vmatprep.subr.mxu0 0.0
        %1709 = vmatpush1.msra.mxu0 0.0
        %1710 = vmatprep.subr.mxu0 0.0
        %1711 = vmatpush1.msra.mxu0 0.0
        %1712 = vmatprep.subr.mxu0 0.0
        %1713 = vmatpush1.msra.mxu0 0.0
        %1714 = vmatprep.subr.mxu0 0.0
        %1715 = vmatpush1.msra.mxu0 0.0
        %1716 = vmatprep.subr.mxu0 0.0
        %1717 = vmatpush1.msra.mxu0 0.0
        %1718 = vmatprep.subr.mxu0 0.0
        %1719 = vmatpush1.msra.mxu0 0.0
        %1720 = vmatprep.subr.mxu0 0.0
        %1721 = vmatpush1.msra.mxu0 0.0
        %1722 = vmatprep.subr.mxu0 0.0
        %1723 = vmatpush1.msra.mxu0 0.0
        %1724 = vmatprep.subr.mxu0 0.0
        %1725 = vmatpush1.msra.mxu0 0.0
        %1726 = vmatprep.subr.mxu0 0.0
        %1727 = vmatpush1.msra.mxu0 0.0
        %1728 = vmatprep.subr.mxu0 0.0
        %1729 = vmatpush1.msra.mxu0 0.0
        %1730 = vmatprep.subr.mxu0 0.0
        %1731 = vmatpush1.msra.mxu0 0.0
        %1732 = vmatprep.mubr.f32.mxu0 0.0
        %1733 = vmatmul.mubr.f32.gmra.mrb[0].mxu0 %v1666
        %v1734 = vpop.f32.mrb[0].mxu0
        %v1735 = vadd.f32 %v1663, %v1734
        %v1736 = vpop.f32.mrb[0].mxu0
        %1737 = vdwg.mxu0
        %v1738 = vmax.f32 %v1735, 0.0
        %v1739 = vld [vmem:[%s10] sm:$0xff]
        %v1740 = vld [vmem:[%s10 + $0x8] sm:$0xff]
        %v1741 = vld [vmem:[%s10 + $0x10] sm:$0xff]
        %v1742 = vld [vmem:[%s10 + $0x18] sm:$0xff]
        %v1743 = vld [vmem:[%s10 + $0x20] sm:$0xff]
        %v1744 = vld [vmem:[%s10 + $0x28] sm:$0xff]
        %v1745 = vld [vmem:[%s10 + $0x30] sm:$0xff]
        %v1746 = vld [vmem:[%s10 + $0x38] sm:$0xff]
        %v1747 = vld [vmem:[%s11] sm:$0x1]
        %v1749 = vlaneseq
        %v1750 = vshrl.u32 %v1749, 7
        %v1751 = vsub.s32 0, %v1750
        %v1752 = vrot.slane %v1747, %v1751
        %vm1754 = vcmask 523264
        %v1756 = vsel %vm1754, %v1738, 0
        %1758 = vmatprep.subr.mxu0 0.0
        %1759 = vmatpush1.msra.mxu0 %v1739
        %1760 = vmatprep.subr.mxu0 0.0
        %1761 = vmatpush1.msra.mxu0 %v1740
        %1762 = vmatprep.subr.mxu0 0.0
        %1763 = vmatpush1.msra.mxu0 %v1741
        %1764 = vmatprep.subr.mxu0 0.0
        %1765 = vmatpush1.msra.mxu0 %v1742
        %1766 = vmatprep.subr.mxu0 0.0
        %1767 = vmatpush1.msra.mxu0 %v1743
        %1768 = vmatprep.subr.mxu0 0.0
        %1769 = vmatpush1.msra.mxu0 %v1744
        %1770 = vmatprep.subr.mxu0 0.0
        %1771 = vmatpush1.msra.mxu0 %v1745
        %1772 = vmatprep.subr.mxu0 0.0
        %1773 = vmatpush1.msra.mxu0 %v1746
        %1774 = vmatprep.subr.mxu0 0.0
        %1775 = vmatpush1.msra.mxu0 0.0
        %1776 = vmatprep.subr.mxu0 0.0
        %1777 = vmatpush1.msra.mxu0 0.0
        %1778 = vmatprep.subr.mxu0 0.0
        %1779 = vmatpush1.msra.mxu0 0.0
        %1780 = vmatprep.subr.mxu0 0.0
        %1781 = vmatpush1.msra.mxu0 0.0
        %1782 = vmatprep.subr.mxu0 0.0
        %1783 = vmatpush1.msra.mxu0 0.0
        %1784 = vmatprep.subr.mxu0 0.0
        %1785 = vmatpush1.msra.mxu0 0.0
        %1786 = vmatprep.subr.mxu0 0.0
        %1787 = vmatpush1.msra.mxu0 0.0
        %1788 = vmatprep.subr.mxu0 0.0
        %1789 = vmatpush1.msra.mxu0 0.0
        %1790 = vmatprep.subr.mxu0 0.0
        %1791 = vmatpush1.msra.mxu0 0.0
        %1792 = vmatprep.subr.mxu0 0.0
        %1793 = vmatpush1.msra.mxu0 0.0
        %1794 = vmatprep.subr.mxu0 0.0
        %1795 = vmatpush1.msra.mxu0 0.0
        %1796 = vmatprep.subr.mxu0 0.0
        %1797 = vmatpush1.msra.mxu0 0.0
        %1798 = vmatprep.subr.mxu0 0.0
        %1799 = vmatpush1.msra.mxu0 0.0
        %1800 = vmatprep.subr.mxu0 0.0
        %1801 = vmatpush1.msra.mxu0 0.0
        %1802 = vmatprep.subr.mxu0 0.0
        %1803 = vmatpush1.msra.mxu0 0.0
        %1804 = vmatprep.subr.mxu0 0.0
        %1805 = vmatpush1.msra.mxu0 0.0
        %1806 = vmatprep.subr.mxu0 0.0
        %1807 = vmatpush1.msra.mxu0 0.0
        %1808 = vmatprep.subr.mxu0 0.0
        %1809 = vmatpush1.msra.mxu0 0.0
        %1810 = vmatprep.subr.mxu0 0.0
        %1811 = vmatpush1.msra.mxu0 0.0
        %1812 = vmatprep.subr.mxu0 0.0
        %1813 = vmatpush1.msra.mxu0 0.0
        %1814 = vmatprep.subr.mxu0 0.0
        %1815 = vmatpush1.msra.mxu0 0.0
        %1816 = vmatprep.subr.mxu0 0.0
        %1817 = vmatpush1.msra.mxu0 0.0
        %1818 = vmatprep.subr.mxu0 0.0
        %1819 = vmatpush1.msra.mxu0 0.0
        %1820 = vmatprep.subr.mxu0 0.0
        %1821 = vmatpush1.msra.mxu0 0.0
        %1822 = vmatprep.mubr.f32.mxu0 0.0
        %1823 = vmatmul.mubr.f32.gmra.mrb[0].mxu0 %v1756
        %v1824 = vpop.f32.mrb[0].mxu0
        %v1825 = vadd.f32 %v1752, %v1824
        %v1826 = vpop.f32.mrb[0].mxu0
        %1827 = vdwg.mxu0
        %v1828 = vadd.f32 %v1825, %v1653
        %v1829 = vsel %vm572, %v1828, 0.0
        %1830 = vadd.xlane.f32.xlu0 %v1829
        %v1831 = vpop.xlane.xlu0 %1830
        %v1832 = vmul.f32 %v1831, %v1627
        %v1833 = vsub.f32 %v1828, %v1832
        %v1834 = vmul.f32 %v1833, %v1833
        %v1835 = vsel %vm572, %v1834, 0.0
        %1836 = vadd.xlane.f32.xlu0 %v1835
        %v1837 = vpop.xlane.xlu0 %1836
        %v1838 = vmul.f32 %v1837, %v1627
        %v1839 = vadd.f32 %v1838, 1e-05
        %v1840 = vrsqrt.pop %v1839
        %v1841 = vmul.f32 %v1833, %v1840
        %v1842 = vld [vmem:[%s12] sm:$0x1]
        %v1844 = vlaneseq
        %v1845 = vshrl.u32 %v1844, 7
        %v1846 = vsub.s32 0, %v1845
        %v1847 = vrot.slane %v1842, %v1846
        %v1849 = vmul.f32 %v1841, %v1847
        %v1850 = vld [vmem:[%s13] sm:$0x1]
        %v1852 = vlaneseq
        %v1853 = vshrl.u32 %v1852, 7
        %v1854 = vsub.s32 0, %v1853
        %v1855 = vrot.slane %v1850, %v1854
        %v1857 = vadd.f32 %v1849, %v1855
        %1858 = vst.msk [vmem:[%s550] sm:$0xff] %vm572, %v1857
        %s1859 = sand.u32 %s351, 1
        %s1860 = scalar_lea.sflag [#allocation4], %s1859
        %s1861 = sand.u32 %s351, 1
        %s1862 = smul.addr %s1861, 8
        %s1863 = scalar_lea.vmem [#allocation7], %s1862
        %s1864 = sand.u32 %s377, 1
        %s1865 = scalar_lea.sflag [#allocation9], %s1864
        %s1866 = sand.u32 %s377, 1
        %s1867 = smul.addr %s1866, 32
        %s1868 = scalar_lea.vmem [#allocation8], %s1867
        // Predicated region
        $region85: #{tpu_custom_call.1} parent=75 // pred_check
          %p1869 = pneg %p361
        $region86: #{tpu_custom_call.1} parent=75 // pred_check_branch
          %1871 = sbr.rel (%p1869) target = $region88
        $region87: #{tpu_custom_call.1} parent=75 // pred_region
          %s1873 = ssub.s32 128, 128
          %1874 = vsyncadd %s1860, %s1873
          %s1875 = smul.addr %s39, 128
          %s1876 = scalar_lea.hbm %s14, %s1875
          %s1878 = sshll.u32 %s1863, 4
          %s1879 = int_to_ptr.vmem [resolvable:$true] %s1878
          %1881 = dma.vmem_to_hbm [thread:$0]  %s1879, 128, %s1876, %s1860
        $region88: #{tpu_custom_call.1} parent=75 // pred_fallthru
          _
        // Predicated region
        $region89: #{tpu_custom_call.1} parent=75 // pred_check
          %p1882 = pneg %p387
        $region90: #{tpu_custom_call.1} parent=75 // pred_check_branch
          %1884 = sbr.rel (%p1882) target = $region92
        $region91: #{tpu_custom_call.1} parent=75 // pred_region
          %s1886 = ssub.s32 512, 512
          %1887 = vsyncadd %s1865, %s1886
          %s1888 = smul.addr %s39, 4
          %s1889 = smul.addr %s1888, 128
          %s1890 = scalar_lea.hbm %s15, %s1889
          %s1891 = sshll.u32 %s1868, 4
          %s1892 = int_to_ptr.vmem [resolvable:$true] %s1891
          %1897 = dma.vmem_to_hbm [thread:$0]  %s1892, 512, %s1890, %s1865, 128, 128, 8
        $region92: #{tpu_custom_call.1} parent=75 // pred_fallthru
          _
      $region76: #{tpu_custom_call.1} parent=5 // pred_fallthru
        _
      %p1898 = scmp.le.s32.totalorder 2, %s34
      // Predicated region
      $region93: #{tpu_custom_call.1} parent=5 // pred_check
        %p1899 = pneg %p1898
      $region94: #{tpu_custom_call.1} parent=5 // pred_check_branch
        %1901 = sbr.rel (%p1899) target = $region96
      $region95: #{tpu_custom_call.1} parent=5 // pred_region
        %s1902 = ssub.s32 %s34, 2
        // Predicated region
        $region97: #{tpu_custom_call.1} parent=95 // pred_check
          %p1903 = pneg %p367
        $region98: #{tpu_custom_call.1} parent=95 // pred_check_branch
          %1905 = sbr.rel (%p1903) target = $region100
        $region99: #{tpu_custom_call.1} parent=95 // pred_region
          %s1906 = sand.u32 %s352, 1
          %s1907 = scalar_lea.sflag [#allocation4], %s1906
          %s1908 = sand.u32 %s352, 1
          %s1909 = smul.addr %s1908, 8
          %s1910 = scalar_lea.vmem [#allocation7], %s1909
          %1911 = dma.done %s1907, 128
        $region100: #{tpu_custom_call.1} parent=95 // pred_fallthru
          _
        // Predicated region
        $region101: #{tpu_custom_call.1} parent=95 // pred_check
          %p1912 = pneg %p393
        $region102: #{tpu_custom_call.1} parent=95 // pred_check_branch
          %1914 = sbr.rel (%p1912) target = $region104
        $region103: #{tpu_custom_call.1} parent=95 // pred_region
          %s1915 = sand.u32 %s378, 1
          %s1916 = scalar_lea.sflag [#allocation9], %s1915
          %s1917 = sand.u32 %s378, 1
          %s1918 = smul.addr %s1917, 32
          %s1919 = scalar_lea.vmem [#allocation8], %s1918
          %1920 = dma.done %s1916, 512
        $region104: #{tpu_custom_call.1} parent=95 // pred_fallthru
          _
      $region96: #{tpu_custom_call.1} parent=5 // pred_fallthru
        _
    $region6: #{tpu_custom_call.1} parent=1 // loop_footer
      %s38 = sadd.s32 1, %s34
    $region7: #{tpu_custom_call.1} parent=1 // loop_footer_branch
      %33 = sbr.rel target = $region3
    $region8: #{tpu_custom_call.1} parent=1 // loop_exit
      _
    %1921 = vsyncpa [#allocation3], 1
    %s1922 = scalar_lea.sflag [#allocation3], 1
    %1923 = vsyncpa %s1922, 1
    %1924 = vsyncpa [#allocation6], 1
    %s1925 = scalar_lea.sflag [#allocation6], 1
    %1926 = vsyncpa %s1925, 1
    %1927 = vsyncpa [#allocation4], 1
    %s1928 = scalar_lea.sflag [#allocation4], 1
    %1929 = vsyncpa %s1928, 1
    %1930 = vsyncpa [#allocation9], 1
    %s1931 = scalar_lea.sflag [#allocation9], 1
    %1932 = vsyncpa %s1931, 1

</llo_original>
